<compile_context>
chip_gen: v7x
topology: tpu7x:2x2x1
jax: 0.10.0
libtpu: 0.0.40
codegen_flags: <defaults>
</compile_context>

<pallas_src>
import jax
import jax.numpy as jnp
from jax import lax
from jax.experimental import pallas as pl
from jax.experimental.pallas import tpu as pltpu

# ---------------- small, module-consistent configuration ----------------
BATCH = 2
NUM_MENTION = 2
NUM_CANDIDATE = 4
MAX_LENGTH_WORD = 2
MAX_LENGTH_SEQ_CHAR = 8
MAX_LENGTH_SEQ_SENCE = 8
DIM_CHAR = 16
OUTPUT_DIM_WORD = 32
D_ENC = 64                                   # encoder() output feature dim
D_PAIR = MAX_LENGTH_WORD * OUTPUT_DIM_WORD   # 64: per mention/candidate feature
D_MLP_EMBED = 64                             # mlp_embed output dim
HID_AVG = 1024                               # hard-coded in averge_mention
HID_SCORE = 128                              # mlp_score hidden dim
CHAR_VOCAB = 50
WORD_VOCAB = 100
COS_EPS = 1e-6

assert MAX_LENGTH_WORD == 2  # the fused kernel splits features by word halves

D_IN = MAX_LENGTH_SEQ_CHAR * DIM_CHAR        # 128 averge_mention input width
RC = BATCH * NUM_MENTION * NUM_CANDIDATE     # 16 scored (b, mention, cand) rows
RM = BATCH * NUM_MENTION                     # 4 mention rows
N_ROWS = 4 * RC                              # 64 averge_mention rows (mentions replicated)
HID_CHUNK = 512                              # hidden chunk per grid step
N_CHUNK = HID_AVG // HID_CHUNK               # grid = (2,)
HALF = OUTPUT_DIM_WORD                       # 32: per-word feature width
WPACK_COLS = 3 * HID_SCORE + D_MLP_EMBED     # 448: [WA | WB | WC | We] lanes


def leaky_relu(x, slope=0.1):
    return jnp.where(x > 0, x, slope * x)


# ---------------- fused Pallas kernel: averge_mention MLP + scoring ----------------
def fused_el_kernel(rows_ref, w1_ref, b1_ref, w2_ref, fsfu_ref, wpack_ref,
                    const_ref, o_ref, acc_ref, lhsa_ref, lhsb_ref):
    f32 = jnp.float32
    k = pl.program_id(0)

    # --- averge_mention: Linear(128,1024) + LeakyReLU(0.1) + Dropout(eval=id)
    #     + Linear(1024,32); one 512-wide hidden chunk per grid step,
    #     accumulated into a resident (64,32) f32 scratch.
    h = jnp.dot(rows_ref[...], w1_ref[...], preferred_element_type=f32) + b1_ref[...]
    h = leaky_relu(h)
    # bf16 activation for the second matmul (intentional quantization; covered
    # by the end-to-end tolerance).
    part = jnp.dot(h.astype(jnp.bfloat16), w2_ref[...], preferred_element_type=f32)

    @pl.when(k == 0)
    def _():
        acc_ref[...] = part

    @pl.when(k != 0)
    def _():
        acc_ref[...] += part

    # --- scoring stage runs once, on the last hidden chunk.
    @pl.when(k == pl.num_programs(0) - 1)
    def _():
        consts = const_ref[...]                       # (8,128) f32
        bs1 = consts[0:1, :]                          # (1,128)
        wcos = consts[1:2, :]                         # (1,128)  s1_cos row
        ws2 = consts[2:3, :]                          # (1,128)  s2_w transposed
        b2 = consts[3:4, 0:HALF]                      # (1,32)
        be = consts[3:4, HALF:HALF + D_MLP_EMBED]     # (1,64)
        bs2 = consts[3:4, 96:97]                      # (1,1)

        out = acc_ref[...] + b2                       # (64,32) averge_mention output
        c0f = out[0:RC, :]                            # (16,32) candidate word0
        c1f = out[RC:2 * RC, :]                       # (16,32) candidate word1
        m0f = out[2 * RC:3 * RC, :]                   # (16,32) mention word0 (replicated)
        m1f = out[3 * RC:4 * RC, :]                   # (16,32) mention word1 (replicated)

        # lane-pack [m0|m1|c0|c1] into one (16,128) tile (static lane-offset stores)
        lhsb_ref[:, 0:HALF] = m0f
        lhsb_ref[:, HALF:2 * HALF] = m1f
        lhsb_ref[:, 2 * HALF:3 * HALF] = c0f
        lhsb_ref[:, 3 * HALF:4 * HALF] = c1f
        lhsb = lhsb_ref[...].astype(jnp.bfloat16)     # bf16 MXU LHS, f32 accum

        # mlp_embed(cat(mention, candidate)) + LeakyReLU — single dot
        e = jnp.dot(lhsb, wpack_ref[:, 3 * HID_SCORE:WPACK_COLS],
                    preferred_element_type=f32) + be
        e = leaky_relu(e)                             # (16,64)

        d0f = m0f * c0f                               # (16,32)
        d1f = m1f * c1f

        # lane-pack [e|d0|d1] into one (16,128) tile
        lhsa_ref[:, 0:D_MLP_EMBED] = e
        lhsa_ref[:, D_MLP_EMBED:D_MLP_EMBED + HALF] = d0f
        lhsa_ref[:, D_MLP_EMBED + HALF:128] = d1f
        lhsa = lhsa_ref[...].astype(jnp.bfloat16)

        # CosineSimilarity(dim=-1, eps=1e-6) on the f32 values; rsqrt -> EUP.
        # TODO(synk): PyTorch clamps each norm to eps separately; this clamps the
        # product (identical unless a vector norm is below 1e-6).
        dmc = jnp.sum(d0f + d1f, axis=-1, keepdims=True)
        n1 = jnp.sum(m0f * m0f + m1f * m1f, axis=-1, keepdims=True)
        n2 = jnp.sum(c0f * c0f + c1f * c1f, axis=-1, keepdims=True)
        cos = dmc * lax.rsqrt(jnp.maximum(n1 * n2, COS_EPS * COS_EPS))   # (16,1)

        # mlp_score layer 1: three (16,128)@(128,128) dots
        #   wpack lanes [0:128)  = [s1_mlp; s1_dot halves]              (matches lhsa)
        #   wpack lanes [128:256)= [Wsum+Wsub halves; Wsum-Wsub halves] (matches lhsb)
        #   wpack lanes [256:384)= [s1_sent; s1_summ]                   (matches fs|fu)
        hsc = (jnp.dot(lhsa, wpack_ref[:, 0:HID_SCORE], preferred_element_type=f32)
               + jnp.dot(lhsb, wpack_ref[:, HID_SCORE:2 * HID_SCORE],
                         preferred_element_type=f32)
               + jnp.dot(fsfu_ref[...], wpack_ref[:, 2 * HID_SCORE:3 * HID_SCORE],
                         preferred_element_type=f32)
               + cos * wcos
               + bs1)
        hsc = leaky_relu(hsc)

        # mlp_score layer 2 (N=1): VPU multiply + lane reduction, no MXU issue.
        o_ref[...] = jnp.sum(hsc * ws2, axis=-1, keepdims=True) + bs2


def fused_el_pallas(rows, fsfu, kp):
    grid_spec = pltpu.PrefetchScalarGridSpec(
        num_scalar_prefetch=0,
        grid=(N_CHUNK,),
        in_specs=[
            pl.BlockSpec((N_ROWS, D_IN), lambda k: (0, 0)),            # rows (64,128) bf16
            pl.BlockSpec((D_IN, HID_CHUNK), lambda k: (0, k)),         # w1 chunk
            pl.BlockSpec((1, HID_CHUNK), lambda k: (0, k)),            # b1 chunk
            pl.BlockSpec((HID_CHUNK, OUTPUT_DIM_WORD), lambda k: (k, 0)),  # w2 chunk
            pl.BlockSpec((RC, 2 * D_ENC), lambda k: (0, 0)),           # fs|fu replicated
            pl.BlockSpec((D_IN, WPACK_COLS), lambda k: (0, 0)),        # packed scoring weights
            pl.BlockSpec((8, 128), lambda k: (0, 0)),                  # packed constants
        ],
        out_specs=pl.BlockSpec((RC, 1), lambda k: (0, 0)),
        scratch_shapes=[
            pltpu.VMEM((N_ROWS, OUTPUT_DIM_WORD), jnp.float32),   # averge_mention accumulator
            pltpu.VMEM((RC, 128), jnp.float32),                   # lane-packed [e|d0|d1]
            pltpu.VMEM((RC, 128), jnp.float32),                   # lane-packed [m0|m1|c0|c1]
        ],
    )
    return pl.pallas_call(
        fused_el_kernel,
        grid_spec=grid_spec,
        out_shape=jax.ShapeDtypeStruct((RC, 1), jnp.float32),
        compiler_params=pltpu.CompilerParams(dimension_semantics=("arbitrary",)),
    )(rows, kp['w1'], kp['b1'], kp['w2'], fsfu, kp['wpack'], kp['consts'])


# ---------------- kernel-ready parameter packing (plain JAX, done once) ----------------
def prepare_kernel_params(p):
    wms = p['s1_sum'] + p['s1_sub']          # mention path:   m @ (Wsum + Wsub)
    wcs = p['s1_sum'] - p['s1_sub']          # candidate path: c @ (Wsum - Wsub)

    wa = jnp.concatenate([p['s1_mlp'], p['s1_dot']], axis=0)       # (128,128) for [e|d0|d1]
    wb = jnp.concatenate([wms, wcs], axis=0)                       # (128,128) for [m0|m1|c0|c1]
    wc = jnp.concatenate([p['s1_sent'], p['s1_summ']], axis=0)     # (128,128) for [fs|fu]
    we = jnp.concatenate([p['emb_wm'], p['emb_wc']], axis=0)       # (128,64) mlp_embed
    wpack = jnp.concatenate([wa, wb, wc, we], axis=1).astype(jnp.bfloat16)
    assert wpack.shape == (D_IN, WPACK_COLS)

    consts = jnp.zeros((8, 128), jnp.float32)
    consts = consts.at[0, :].set(p['s1_b'][0])                     # bs1
    consts = consts.at[1, :].set(p['s1_cos'][0])                   # cosine weight row
    consts = consts.at[2, :].set(p['s2_w'][:, 0])                  # ws2 transposed
    consts = consts.at[3, 0:HALF].set(p['avg_b2'][0])              # b2
    consts = consts.at[3, HALF:HALF + D_MLP_EMBED].set(p['emb_b'][0])  # be
    consts = consts.at[3, 96].set(p['s2_b'][0, 0])                 # bs2

    return dict(
        w1=p['avg_w1'].astype(jnp.bfloat16),       # (128,1024)
        b1=p['avg_b1'],                            # (1,1024) f32
        w2=p['avg_w2'].astype(jnp.bfloat16),       # (1024,32)
        wpack=wpack,                               # (128,448) bf16
        consts=consts,                             # (8,128) f32
    )


# ---------------- plain-JAX (f32) reference, mirrors the PyTorch module ----------------
def avg_mlp_ref(x, w1, b1, w2, b2):
    h = leaky_relu(x @ w1 + b1)
    return h @ w2 + b2


def score_ref(m, c, s, u, p):
    e = leaky_relu(m @ p['emb_wm'] + c @ p['emb_wc'] + p['emb_b'])
    dot = jnp.sum(m * c, -1, keepdims=True)
    denom = jnp.sqrt(jnp.maximum(jnp.sum(m * m, -1, keepdims=True)
                                 * jnp.sum(c * c, -1, keepdims=True),
                                 COS_EPS * COS_EPS))
    cos = dot / denom
    h = (s @ p['s1_sent'] + e @ p['s1_mlp'] + (m * c) @ p['s1_dot']
         + (m + c) @ p['s1_sum'] + (m - c) @ p['s1_sub'] + cos * p['s1_cos']
         + u @ p['s1_summ'] + p['s1_b'])
    h = leaky_relu(h)
    return h @ p['s2_w'] + p['s2_b']


def entity_linking_forward_ref(p, idx_cand, idx_ment, idx_sent, idx_summ):
    B, NM, NC, MW = BATCH, NUM_MENTION, NUM_CANDIDATE, MAX_LENGTH_WORD
    fc = p['char_embed'][idx_cand].reshape(B * NM * NC * MW, D_IN)
    fm = p['char_embed'][idx_ment].reshape(B * NM * MW, D_IN)
    fs = p['word_embed'][idx_sent].mean(axis=1)
    fu = p['word_embed'][idx_summ].mean(axis=1)

    rows = jnp.concatenate([fc, fm], axis=0)
    out = avg_mlp_ref(rows, p['avg_w1'], p['avg_b1'], p['avg_w2'], p['avg_b2'])

    n_c = B * NM * NC * MW
    feat_c = out[:n_c].reshape(B, NM, NC, MW * OUTPUT_DIM_WORD)
    feat_m = out[n_c:].reshape(B, NM, MW * OUTPUT_DIM_WORD)

    feat_m_rep = jnp.broadcast_to(feat_m[:, :, None, :], (B, NM, NC, D_PAIR))
    fs_rep = jnp.broadcast_to(fs[:, None, None, :], (B, NM, NC, D_ENC))
    fu_rep = jnp.broadcast_to(fu[:, None, None, :], (B, NM, NC, D_ENC))

    R = B * NM * NC
    scores = score_ref(feat_m_rep.reshape(R, D_PAIR),
                       feat_c.reshape(R, D_PAIR),
                       fs_rep.reshape(R, D_ENC),
                       fu_rep.reshape(R, D_ENC), p)
    return scores.reshape(B, NM, NC)


# ---------------- Pallas forward (jit-fused gathers/packing + one pallas_call) ----------
@jax.jit
def entity_linking_forward_pallas(p, kp, idx_cand, idx_ment, idx_sent, idx_summ):
    B, NM, NC = BATCH, NUM_MENTION, NUM_CANDIDATE
    fc = p['char_embed'][idx_cand]                  # (B,NM,NC,MW,MSC,dim_char)
    fm = p['char_embed'][idx_ment]                  # (B,NM,MW,MSC,dim_char)
    fs = p['word_embed'][idx_sent].mean(axis=1)     # (B, D_ENC)  mean-pool encoder
    fu = p['word_embed'][idx_summ].mean(axis=1)     # (B, D_ENC)

    # split word slots up front; pre-replicate mention rows per candidate so the
    # kernel never needs selector matmuls / reshapes.
    fc_w0 = fc[:, :, :, 0].reshape(B * NM * NC, D_IN)
    fc_w1 = fc[:, :, :, 1].reshape(B * NM * NC, D_IN)
    fm_w0 = jnp.repeat(fm[:, :, 0].reshape(B * NM, D_IN), NC, axis=0)
    fm_w1 = jnp.repeat(fm[:, :, 1].reshape(B * NM, D_IN), NC, axis=0)
    rows = jnp.concatenate([fc_w0, fc_w1, fm_w0, fm_w1], axis=0)   # (64,128)
    rows = rows.astype(jnp.bfloat16)                # bf16 MXU operand, f32 accum

    # sentence|summary features, replicated per scored row (16,128)
    fsfu = jnp.concatenate([fs, fu], axis=-1)                       # (B,128)
    fsfu_rep = jnp.repeat(fsfu, NM * NC, axis=0).astype(jnp.bfloat16)

    scores = fused_el_pallas(rows, fsfu_rep, kp)    # (16,1)
    return scores.reshape(B, NM, NC)


# ---------------- parameter init (deterministic, synthetic) ----------------
def init_params(key):
    ks = jax.random.split(key, 14)

    def lin(k, din, dout):
        return jax.random.normal(k, (din, dout), jnp.float32) / jnp.sqrt(float(din))

    p = {}
    p['char_embed'] = jax.random.normal(ks[0], (CHAR_VOCAB, DIM_CHAR), jnp.float32)
    p['word_embed'] = jax.random.normal(ks[1], (WORD_VOCAB, D_ENC), jnp.float32)
    # averge_mention: Linear(128,1024) -> LeakyReLU(0.1) -> Dropout -> Linear(1024,32)
    p['avg_w1'] = lin(ks[2], D_IN, HID_AVG)
    p['avg_b1'] = 0.01 * jax.random.normal(ks[3], (1, HID_AVG), jnp.float32)
    p['avg_w2'] = lin(ks[4], HID_AVG, OUTPUT_DIM_WORD)
    p['avg_b2'] = 0.01 * jax.random.normal(ks[5], (1, OUTPUT_DIM_WORD), jnp.float32)
    # mlp_embed: Linear(2*D_PAIR, D_MLP_EMBED) + LeakyReLU (split mention/candidate halves)
    w_e = lin(ks[6], 2 * D_PAIR, D_MLP_EMBED)
    p['emb_wm'] = w_e[:D_PAIR]
    p['emb_wc'] = w_e[D_PAIR:]
    p['emb_b'] = 0.01 * jax.random.normal(ks[7], (1, D_MLP_EMBED), jnp.float32)
    # mlp_score: Linear(F, 128) + LeakyReLU + Linear(128, 1)
    feat_dim = D_ENC + D_MLP_EMBED + 3 * D_PAIR + 1 + D_ENC
    w_s1 = lin(ks[8], feat_dim, HID_SCORE)
    off = 0
    for name, d in [('s1_sent', D_ENC), ('s1_mlp', D_MLP_EMBED), ('s1_dot', D_PAIR),
                    ('s1_sum', D_PAIR), ('s1_sub', D_PAIR), ('s1_cos', 1),
                    ('s1_summ', D_ENC)]:
        p[name] = w_s1[off:off + d]
        off += d
    p['s1_b'] = 0.01 * jax.random.normal(ks[9], (1, HID_SCORE), jnp.float32)
    p['s2_w'] = lin(ks[10], HID_SCORE, 1)
    p['s2_b'] = 0.01 * jax.random.normal(ks[11], (1, 1), jnp.float32)
    return p


if __name__ == "__main__":
    key = jax.random.PRNGKey(0)
    k_par, k1, k2, k3, k4 = jax.random.split(key, 5)
    params = init_params(k_par)
    kparams = prepare_kernel_params(params)

    idx_cand = jax.random.randint(
        k1, (BATCH, NUM_MENTION, NUM_CANDIDATE, MAX_LENGTH_WORD, MAX_LENGTH_SEQ_CHAR),
        0, CHAR_VOCAB, dtype=jnp.int32)
    idx_ment = jax.random.randint(
        k2, (BATCH, NUM_MENTION, MAX_LENGTH_WORD, MAX_LENGTH_SEQ_CHAR),
        0, CHAR_VOCAB, dtype=jnp.int32)
    idx_sent = jax.random.randint(k3, (BATCH, MAX_LENGTH_SEQ_SENCE), 0, WORD_VOCAB, dtype=jnp.int32)
    idx_summ = jax.random.randint(k4, (BATCH, MAX_LENGTH_SEQ_SENCE), 0, WORD_VOCAB, dtype=jnp.int32)

    out = entity_linking_forward_pallas(params, kparams, idx_cand, idx_ment, idx_sent, idx_summ)
    out = jax.block_until_ready(out)

    ref = entity_linking_forward_ref(params, idx_cand, idx_ment, idx_sent, idx_summ)
    ref = jax.block_until_ready(ref)

    assert out.shape == (BATCH, NUM_MENTION, NUM_CANDIDATE)
    # tolerance covers the intentional bf16 storage of the averge_mention / scoring
    # weights and the bf16 hidden-activation cast (f32 accumulation everywhere).
    assert bool(jnp.allclose(out, ref, rtol=5e-2, atol=5e-2)), "pallas vs reference mismatch"
    print("KERNEL_OK")
</pallas_src>

<mosaic_0001>
module attributes {stable_mosaic.version = 11 : i64} {
  func.func @fused_el_kernel(%arg0: i32, %arg1: memref<64x128xbf16, #tpu.memory_space<vmem>>, %arg2: memref<128x512xbf16, #tpu.memory_space<vmem>>, %arg3: memref<1x512xf32, #tpu.memory_space<vmem>>, %arg4: memref<512x32xbf16, #tpu.memory_space<vmem>>, %arg5: memref<16x128xbf16, #tpu.memory_space<vmem>>, %arg6: memref<128x448xbf16, #tpu.memory_space<vmem>>, %arg7: memref<8x128xf32, #tpu.memory_space<vmem>>, %arg8: memref<16x1xf32, #tpu.memory_space<vmem>>, %arg9: memref<64x32xf32, #tpu.memory_space<vmem>>, %arg10: memref<16x128xf32, #tpu.memory_space<vmem>>, %arg11: memref<16x128xf32, #tpu.memory_space<vmem>>) attributes {dimension_semantics = [#tpu.dimension_semantics<arbitrary>], iteration_bounds = array<i64: 2>, scalar_prefetch = 0 : i64, scratch_operands = 3 : i64, tpu.core_type = #tpu.core_type<tc>, window_params = [{pipeline_mode = #tpu.pipeline_mode<synchronous>, transform_indices = @transform_0, window_bounds = array<i64: 64, 128>}, {transform_indices = @transform_1, window_bounds = array<i64: 128, 512>}, {transform_indices = @transform_2, window_bounds = array<i64: 1, 512>}, {transform_indices = @transform_3, window_bounds = array<i64: 512, 32>}, {pipeline_mode = #tpu.pipeline_mode<synchronous>, transform_indices = @transform_4, window_bounds = array<i64: 16, 128>}, {pipeline_mode = #tpu.pipeline_mode<synchronous>, transform_indices = @transform_5, window_bounds = array<i64: 128, 448>}, {pipeline_mode = #tpu.pipeline_mode<synchronous>, transform_indices = @transform_6, window_bounds = array<i64: 8, 128>}, {pipeline_mode = #tpu.pipeline_mode<synchronous>, transform_indices = @transform_7, window_bounds = array<i64: 16, 1>}]} {
    %c0 = arith.constant 0 : index
    %c0_0 = arith.constant 0 : index
    %0 = vector.load %arg1[%c0, %c0_0] : memref<64x128xbf16, #tpu.memory_space<vmem>>, vector<64x128xbf16>
    %c0_1 = arith.constant 0 : index
    %c0_2 = arith.constant 0 : index
    %1 = vector.load %arg2[%c0_1, %c0_2] : memref<128x512xbf16, #tpu.memory_space<vmem>>, vector<128x512xbf16>
    %cst = arith.constant dense<0.000000e+00> : vector<64x512xf32>
    %2 = tpu.matmul %0, %1, %cst {dimension_numbers = #tpu.dot_dimension_numbers<[1], [0], [0], [1], [0, 0, 1, 1], [], []>} : vector<64x128xbf16>, vector<128x512xbf16>, vector<64x512xf32> -> vector<64x512xf32>
    %c0_3 = arith.constant 0 : index
    %c0_4 = arith.constant 0 : index
    %3 = vector.load %arg3[%c0_3, %c0_4] : memref<1x512xf32, #tpu.memory_space<vmem>>, vector<1x512xf32>
    %4 = vector.broadcast %3 : vector<1x512xf32> to vector<64x512xf32>
    %5 = arith.addf %2, %4 : vector<64x512xf32>
    %cst_5 = arith.constant 0.000000e+00 : f32
    %6 = vector.broadcast %cst_5 : f32 to vector<64x512xf32>
    %7 = arith.cmpf ogt, %5, %6 : vector<64x512xf32>
    %cst_6 = arith.constant 1.000000e-01 : f32
    %8 = vector.broadcast %cst_6 : f32 to vector<64x512xf32>
    %9 = arith.mulf %8, %5 : vector<64x512xf32>
    %10 = arith.select %7, %5, %9 : vector<64x512xi1>, vector<64x512xf32>
    %11 = arith.truncf %10 : vector<64x512xf32> to vector<64x512xbf16>
    %c0_7 = arith.constant 0 : index
    %c0_8 = arith.constant 0 : index
    %12 = vector.load %arg4[%c0_7, %c0_8] : memref<512x32xbf16, #tpu.memory_space<vmem>>, vector<512x32xbf16>
    %cst_9 = arith.constant dense<0.000000e+00> : vector<64x32xf32>
    %13 = tpu.matmul %11, %12, %cst_9 {dimension_numbers = #tpu.dot_dimension_numbers<[1], [0], [0], [1], [0, 0, 1, 1], [], []>} : vector<64x512xbf16>, vector<512x32xbf16>, vector<64x32xf32> -> vector<64x32xf32>
    %c0_i32 = arith.constant 0 : i32
    %14 = arith.cmpi eq, %arg0, %c0_i32 : i32
    %15 = arith.extui %14 : i1 to i32
    %c0_i32_10 = arith.constant 0 : i32
    %16 = arith.cmpi ne, %15, %c0_i32_10 : i32
    scf.if %16 {
      %c0_14 = arith.constant 0 : index
      %c0_15 = arith.constant 0 : index
      %23 = vector.load %arg9[%c0_14, %c0_15] : memref<64x32xf32, #tpu.memory_space<vmem>>, vector<64x32xf32>
      tpu.vector_store %arg9[%c0_14, %c0_15], %13 {strides = array<i32>} : memref<64x32xf32, #tpu.memory_space<vmem>>, vector<64x32xf32>,
    } else {
    }
    %c0_i32_11 = arith.constant 0 : i32
    %17 = arith.cmpi ne, %arg0, %c0_i32_11 : i32
    %18 = arith.extui %17 : i1 to i32
    %c0_i32_12 = arith.constant 0 : i32
    %19 = arith.cmpi ne, %18, %c0_i32_12 : i32
    scf.if %19 {
      %c0_14 = arith.constant 0 : index
      %c0_15 = arith.constant 0 : index
      %23 = vector.load %arg9[%c0_14, %c0_15] : memref<64x32xf32, #tpu.memory_space<vmem>>, vector<64x32xf32>
      %24 = arith.addf %23, %13 : vector<64x32xf32>
      %c0_16 = arith.constant 0 : index
      %c0_17 = arith.constant 0 : index
      %25 = vector.load %arg9[%c0_16, %c0_17] : memref<64x32xf32, #tpu.memory_space<vmem>>, vector<64x32xf32>
      tpu.vector_store %arg9[%c0_16, %c0_17], %24 {strides = array<i32>} : memref<64x32xf32, #tpu.memory_space<vmem>>, vector<64x32xf32>,
    } else {
    }
    %c1_i32 = arith.constant 1 : i32
    %20 = arith.cmpi eq, %arg0, %c1_i32 : i32
    %21 = arith.extui %20 : i1 to i32
    %c0_i32_13 = arith.constant 0 : i32
    %22 = arith.cmpi ne, %21, %c0_i32_13 : i32
    scf.if %22 {
      %c0_14 = arith.constant 0 : index
      %c0_15 = arith.constant 0 : index
      %23 = vector.load %arg7[%c0_14, %c0_15] : memref<8x128xf32, #tpu.memory_space<vmem>>, vector<8x128xf32>
      %24 = vector.extract_strided_slice %23 {offsets = [0, 0], sizes = [1, 128], strides = [1, 1]} : vector<8x128xf32> to vector<1x128xf32>
      %25 = vector.extract_strided_slice %23 {offsets = [1, 0], sizes = [1, 128], strides = [1, 1]} : vector<8x128xf32> to vector<1x128xf32>
      %26 = vector.extract_strided_slice %23 {offsets = [2, 0], sizes = [1, 128], strides = [1, 1]} : vector<8x128xf32> to vector<1x128xf32>
      %27 = vector.extract_strided_slice %23 {offsets = [3, 0], sizes = [1, 32], strides = [1, 1]} : vector<8x128xf32> to vector<1x32xf32>
      %28 = vector.extract_strided_slice %23 {offsets = [3, 32], sizes = [1, 64], strides = [1, 1]} : vector<8x128xf32> to vector<1x64xf32>
      %29 = vector.extract_strided_slice %23 {offsets = [3, 96], sizes = [1, 1], strides = [1, 1]} : vector<8x128xf32> to vector<1x1xf32>
      %c0_16 = arith.constant 0 : index
      %c0_17 = arith.constant 0 : index
      %30 = vector.load %arg9[%c0_16, %c0_17] : memref<64x32xf32, #tpu.memory_space<vmem>>, vector<64x32xf32>
      %31 = vector.broadcast %27 : vector<1x32xf32> to vector<64x32xf32>
      %32 = arith.addf %30, %31 : vector<64x32xf32>
      %33 = vector.extract_strided_slice %32 {offsets = [0, 0], sizes = [16, 32], strides = [1, 1]} : vector<64x32xf32> to vector<16x32xf32>
      %34 = vector.extract_strided_slice %32 {offsets = [16, 0], sizes = [16, 32], strides = [1, 1]} : vector<64x32xf32> to vector<16x32xf32>
      %35 = vector.extract_strided_slice %32 {offsets = [32, 0], sizes = [16, 32], strides = [1, 1]} : vector<64x32xf32> to vector<16x32xf32>
      %36 = vector.extract_strided_slice %32 {offsets = [48, 0], sizes = [16, 32], strides = [1, 1]} : vector<64x32xf32> to vector<16x32xf32>
      %c0_18 = arith.constant 0 : index
      %c0_19 = arith.constant 0 : index
      %37 = vector.load %arg11[%c0_18, %c0_19] : memref<16x128xf32, #tpu.memory_space<vmem>>, vector<16x32xf32>
      tpu.vector_store %arg11[%c0_18, %c0_19], %35 {strides = array<i32>} : memref<16x128xf32, #tpu.memory_space<vmem>>, vector<16x32xf32>,
      %c0_20 = arith.constant 0 : index
      %c32 = arith.constant 32 : index
      %38 = vector.load %arg11[%c0_20, %c32] : memref<16x128xf32, #tpu.memory_space<vmem>>, vector<16x32xf32>
      tpu.vector_store %arg11[%c0_20, %c32], %36 {strides = array<i32>} : memref<16x128xf32, #tpu.memory_space<vmem>>, vector<16x32xf32>,
      %c0_21 = arith.constant 0 : index
      %c64 = arith.constant 64 : index
      %39 = vector.load %arg11[%c0_21, %c64] : memref<16x128xf32, #tpu.memory_space<vmem>>, vector<16x32xf32>
      tpu.vector_store %arg11[%c0_21, %c64], %33 {strides = array<i32>} : memref<16x128xf32, #tpu.memory_space<vmem>>, vector<16x32xf32>,
      %c0_22 = arith.constant 0 : index
      %c96 = arith.constant 96 : index
      %40 = vector.load %arg11[%c0_22, %c96] : memref<16x128xf32, #tpu.memory_space<vmem>>, vector<16x32xf32>
      tpu.vector_store %arg11[%c0_22, %c96], %34 {strides = array<i32>} : memref<16x128xf32, #tpu.memory_space<vmem>>, vector<16x32xf32>,
      %c0_23 = arith.constant 0 : index
      %c0_24 = arith.constant 0 : index
      %41 = vector.load %arg11[%c0_23, %c0_24] : memref<16x128xf32, #tpu.memory_space<vmem>>, vector<16x128xf32>
      %42 = arith.truncf %41 : vector<16x128xf32> to vector<16x128xbf16>
      %c0_25 = arith.constant 0 : index
      %c384 = arith.constant 384 : index
      %43 = vector.load %arg6[%c0_25, %c384] : memref<128x448xbf16, #tpu.memory_space<vmem>>, vector<128x64xbf16>
      %cst_26 = arith.constant dense<0.000000e+00> : vector<16x64xf32>
      %44 = tpu.matmul %42, %43, %cst_26 {dimension_numbers = #tpu.dot_dimension_numbers<[1], [0], [0], [1], [0, 0, 1, 1], [], []>} : vector<16x128xbf16>, vector<128x64xbf16>, vector<16x64xf32> -> vector<16x64xf32>
      %45 = vector.broadcast %28 : vector<1x64xf32> to vector<16x64xf32>
      %46 = arith.addf %44, %45 : vector<16x64xf32>
      %cst_27 = arith.constant 0.000000e+00 : f32
      %47 = vector.broadcast %cst_27 : f32 to vector<16x64xf32>
      %48 = arith.cmpf ogt, %46, %47 : vector<16x64xf32>
      %cst_28 = arith.constant 1.000000e-01 : f32
      %49 = vector.broadcast %cst_28 : f32 to vector<16x64xf32>
      %50 = arith.mulf %49, %46 : vector<16x64xf32>
      %51 = arith.select %48, %46, %50 : vector<16x64xi1>, vector<16x64xf32>
      %52 = arith.mulf %35, %33 : vector<16x32xf32>
      %53 = arith.mulf %36, %34 : vector<16x32xf32>
      %c0_29 = arith.constant 0 : index
      %c0_30 = arith.constant 0 : index
      %54 = vector.load %arg10[%c0_29, %c0_30] : memref<16x128xf32, #tpu.memory_space<vmem>>, vector<16x64xf32>
      tpu.vector_store %arg10[%c0_29, %c0_30], %51 {strides = array<i32>} : memref<16x128xf32, #tpu.memory_space<vmem>>, vector<16x64xf32>,
      %c0_31 = arith.constant 0 : index
      %c64_32 = arith.constant 64 : index
      %55 = vector.load %arg10[%c0_31, %c64_32] : memref<16x128xf32, #tpu.memory_space<vmem>>, vector<16x32xf32>
      tpu.vector_store %arg10[%c0_31, %c64_32], %52 {strides = array<i32>} : memref<16x128xf32, #tpu.memory_space<vmem>>, vector<16x32xf32>,
      %c0_33 = arith.constant 0 : index
      %c96_34 = arith.constant 96 : index
      %56 = vector.load %arg10[%c0_33, %c96_34] : memref<16x128xf32, #tpu.memory_space<vmem>>, vector<16x32xf32>
      tpu.vector_store %arg10[%c0_33, %c96_34], %53 {strides = array<i32>} : memref<16x128xf32, #tpu.memory_space<vmem>>, vector<16x32xf32>,
      %c0_35 = arith.constant 0 : index
      %c0_36 = arith.constant 0 : index
      %57 = vector.load %arg10[%c0_35, %c0_36] : memref<16x128xf32, #tpu.memory_space<vmem>>, vector<16x128xf32>
      %58 = arith.truncf %57 : vector<16x128xf32> to vector<16x128xbf16>
      %59 = arith.addf %52, %53 : vector<16x32xf32>
      %cst_37 = arith.constant dense<0.000000e+00> : vector<16xf32>
      %60 = vector.multi_reduction <add>, %59, %cst_37 [1] : vector<16x32xf32> to vector<16xf32>
      %61 = vector.shape_cast %60 : vector<16xf32> to vector<16x1xf32>
      %62 = arith.mulf %35, %35 : vector<16x32xf32>
      %63 = arith.mulf %36, %36 : vector<16x32xf32>
      %64 = arith.addf %62, %63 : vector<16x32xf32>
      %cst_38 = arith.constant dense<0.000000e+00> : vector<16xf32>
      %65 = vector.multi_reduction <add>, %64, %cst_38 [1] : vector<16x32xf32> to vector<16xf32>
      %66 = vector.shape_cast %65 : vector<16xf32> to vector<16x1xf32>
      %67 = arith.mulf %33, %33 : vector<16x32xf32>
      %68 = arith.mulf %34, %34 : vector<16x32xf32>
      %69 = arith.addf %67, %68 : vector<16x32xf32>
      %cst_39 = arith.constant dense<0.000000e+00> : vector<16xf32>
      %70 = vector.multi_reduction <add>, %69, %cst_39 [1] : vector<16x32xf32> to vector<16xf32>
      %71 = vector.shape_cast %70 : vector<16xf32> to vector<16x1xf32>
      %72 = arith.mulf %66, %71 : vector<16x1xf32>
      %cst_40 = arith.constant 9.99999996E-13 : f32
      %73 = vector.broadcast %cst_40 : f32 to vector<16x1xf32>
      %74 = arith.maximumf %72, %73 : vector<16x1xf32>
      %75 = math.rsqrt %74 : vector<16x1xf32>
      %76 = arith.mulf %61, %75 : vector<16x1xf32>
      %c0_41 = arith.constant 0 : index
      %c0_42 = arith.constant 0 : index
      %77 = vector.load %arg6[%c0_41, %c0_42] : memref<128x448xbf16, #tpu.memory_space<vmem>>, vector<128x128xbf16>
      %cst_43 = arith.constant dense<0.000000e+00> : vector<16x128xf32>
      %78 = tpu.matmul %58, %77, %cst_43 {dimension_numbers = #tpu.dot_dimension_numbers<[1], [0], [0], [1], [0, 0, 1, 1], [], []>} : vector<16x128xbf16>, vector<128x128xbf16>, vector<16x128xf32> -> vector<16x128xf32>
      %c0_44 = arith.constant 0 : index
      %c128 = arith.constant 128 : index
      %79 = vector.load %arg6[%c0_44, %c128] : memref<128x448xbf16, #tpu.memory_space<vmem>>, vector<128x128xbf16>
      %cst_45 = arith.constant dense<0.000000e+00> : vector<16x128xf32>
      %80 = tpu.matmul %42, %79, %cst_45 {dimension_numbers = #tpu.dot_dimension_numbers<[1], [0], [0], [1], [0, 0, 1, 1], [], []>} : vector<16x128xbf16>, vector<128x128xbf16>, vector<16x128xf32> -> vector<16x128xf32>
      %81 = arith.addf %78, %80 : vector<16x128xf32>
      %c0_46 = arith.constant 0 : index
      %c0_47 = arith.constant 0 : index
      %82 = vector.load %arg5[%c0_46, %c0_47] : memref<16x128xbf16, #tpu.memory_space<vmem>>, vector<16x128xbf16>
      %c0_48 = arith.constant 0 : index
      %c256 = arith.constant 256 : index
      %83 = vector.load %arg6[%c0_48, %c256] : memref<128x448xbf16, #tpu.memory_space<vmem>>, vector<128x128xbf16>
      %cst_49 = arith.constant dense<0.000000e+00> : vector<16x128xf32>
      %84 = tpu.matmul %82, %83, %cst_49 {dimension_numbers = #tpu.dot_dimension_numbers<[1], [0], [0], [1], [0, 0, 1, 1], [], []>} : vector<16x128xbf16>, vector<128x128xbf16>, vector<16x128xf32> -> vector<16x128xf32>
      %85 = arith.addf %81, %84 : vector<16x128xf32>
      %86 = vector.broadcast %76 : vector<16x1xf32> to vector<16x128xf32>
      %87 = vector.broadcast %25 : vector<1x128xf32> to vector<16x128xf32>
      %88 = arith.mulf %86, %87 : vector<16x128xf32>
      %89 = arith.addf %85, %88 : vector<16x128xf32>
      %90 = vector.broadcast %24 : vector<1x128xf32> to vector<16x128xf32>
      %91 = arith.addf %89, %90 : vector<16x128xf32>
      %cst_50 = arith.constant 0.000000e+00 : f32
      %92 = vector.broadcast %cst_50 : f32 to vector<16x128xf32>
      %93 = arith.cmpf ogt, %91, %92 : vector<16x128xf32>
      %cst_51 = arith.constant 1.000000e-01 : f32
      %94 = vector.broadcast %cst_51 : f32 to vector<16x128xf32>
      %95 = arith.mulf %94, %91 : vector<16x128xf32>
      %96 = arith.select %93, %91, %95 : vector<16x128xi1>, vector<16x128xf32>
      %97 = vector.broadcast %26 : vector<1x128xf32> to vector<16x128xf32>
      %98 = arith.mulf %96, %97 : vector<16x128xf32>
      %cst_52 = arith.constant dense<0.000000e+00> : vector<16xf32>
      %99 = vector.multi_reduction <add>, %98, %cst_52 [1] : vector<16x128xf32> to vector<16xf32>
      %100 = vector.shape_cast %99 : vector<16xf32> to vector<16x1xf32>
      %101 = vector.broadcast %29 : vector<1x1xf32> to vector<16x1xf32>
      %102 = arith.addf %100, %101 : vector<16x1xf32>
      %c0_53 = arith.constant 0 : index
      %c0_54 = arith.constant 0 : index
      %103 = vector.load %arg8[%c0_53, %c0_54] : memref<16x1xf32, #tpu.memory_space<vmem>>, vector<16x1xf32>
      tpu.vector_store %arg8[%c0_53, %c0_54], %102 {strides = array<i32>} : memref<16x1xf32, #tpu.memory_space<vmem>>, vector<16x1xf32>,
    } else {
    }
    return
  }
  func.func @transform_0(%arg0: i32) -> (i32, i32) {
    %c0_i32 = arith.constant 0 : i32
    %c0_i32_0 = arith.constant 0 : i32
    %c0_i32_1 = arith.constant 0 : i32
    return %c0_i32, %c0_i32_0 : i32, i32
  }
  func.func @transform_1(%arg0: i32) -> (i32, i32) {
    %c0_i32 = arith.constant 0 : i32
    %c0_i32_0 = arith.constant 0 : i32
    return %c0_i32, %arg0 : i32, i32
  }
  func.func @transform_2(%arg0: i32) -> (i32, i32) {
    %c0_i32 = arith.constant 0 : i32
    %c0_i32_0 = arith.constant 0 : i32
    return %c0_i32, %arg0 : i32, i32
  }
  func.func @transform_3(%arg0: i32) -> (i32, i32) {
    %c0_i32 = arith.constant 0 : i32
    %c0_i32_0 = arith.constant 0 : i32
    return %arg0, %c0_i32 : i32, i32
  }
  func.func @transform_4(%arg0: i32) -> (i32, i32) {
    %c0_i32 = arith.constant 0 : i32
    %c0_i32_0 = arith.constant 0 : i32
    %c0_i32_1 = arith.constant 0 : i32
    return %c0_i32, %c0_i32_0 : i32, i32
  }
  func.func @transform_5(%arg0: i32) -> (i32, i32) {
    %c0_i32 = arith.constant 0 : i32
    %c0_i32_0 = arith.constant 0 : i32
    %c0_i32_1 = arith.constant 0 : i32
    return %c0_i32, %c0_i32_0 : i32, i32
  }
  func.func @transform_6(%arg0: i32) -> (i32, i32) {
    %c0_i32 = arith.constant 0 : i32
    %c0_i32_0 = arith.constant 0 : i32
    %c0_i32_1 = arith.constant 0 : i32
    return %c0_i32, %c0_i32_0 : i32, i32
  }
  func.func @transform_7(%arg0: i32) -> (i32, i32) {
    %c0_i32 = arith.constant 0 : i32
    %c0_i32_0 = arith.constant 0 : i32
    %c0_i32_1 = arith.constant 0 : i32
    return %c0_i32, %c0_i32_0 : i32, i32
  }
}

</mosaic_0001>

<llo_original>
// kernel: squeeze.1
$region0: #{squeeze.1}
  %s0 = inlined_call_operand.vmem [shape: bf16[2,2,4,1,8,16], index: 0, kind: input, shape index: {}]
  %s1 = inlined_call_operand.vmem [shape: bf16[16,128], index: 1, kind: output, shape index: {}]
  $region1: #{squeeze.1} parent=0
    #allocation0 [shape = 'u8[8192]{0}', space=vmem, size = 0x2000, scoped, tag = 'scoped mem for output reshape']
    #allocation1 [shape = 'u8[65536]{0}', space=vmem, size = 0x10000, scoped, tag = 'scoped mem for input reshape']
    %s3 = smul.u32 4, 2
    %s4 = sshllo.u32 0, %s3
    %s5 = smul.addr 4, 15
    %s6 = scalar_lea.vmem %s0, %s5
    %s7 = sshrl.u32 %s4, 1
    %s8 = sor.u32 %s4, %s7
    %s9 = sand.u32 %s8, 85
    %s10 = sshrl.u32 %s9, 1
    %s11 = sor.u32 %s9, %s10
    %s12 = sand.u32 51, %s11
    %s13 = sshrl.u32 %s12, 2
    %s14 = sor.u32 %s12, %s13
    %s15 = sand.u32 15, %s14
    %v16 = vld [vmem:[%s6] sm:%s15]
    %v17 = vunpack.c.l.bf16 %v16
    %v18 = vunpack.c.h.bf16 %v16
    %s19 = scalar_lea.vmem [#allocation1], 120
    %20 = vst [vmem:[%s19] sm:%s4] %v17
    %s21 = smul.addr 4, 14
    %s22 = scalar_lea.vmem %s0, %s21
    %s23 = sshrl.u32 %s4, 1
    %s24 = sor.u32 %s4, %s23
    %s25 = sand.u32 %s24, 85
    %s26 = sshrl.u32 %s25, 1
    %s27 = sor.u32 %s25, %s26
    %s28 = sand.u32 51, %s27
    %s29 = sshrl.u32 %s28, 2
    %s30 = sor.u32 %s28, %s29
    %s31 = sand.u32 15, %s30
    %v32 = vld [vmem:[%s22] sm:%s31]
    %v33 = vunpack.c.l.bf16 %v32
    %v34 = vunpack.c.h.bf16 %v32
    %s35 = scalar_lea.vmem [#allocation1], 112
    %36 = vst [vmem:[%s35] sm:%s4] %v33
    %s37 = smul.addr 4, 13
    %s38 = scalar_lea.vmem %s0, %s37
    %s39 = sshrl.u32 %s4, 1
    %s40 = sor.u32 %s4, %s39
    %s41 = sand.u32 %s40, 85
    %s42 = sshrl.u32 %s41, 1
    %s43 = sor.u32 %s41, %s42
    %s44 = sand.u32 51, %s43
    %s45 = sshrl.u32 %s44, 2
    %s46 = sor.u32 %s44, %s45
    %s47 = sand.u32 15, %s46
    %v48 = vld [vmem:[%s38] sm:%s47]
    %v49 = vunpack.c.l.bf16 %v48
    %v50 = vunpack.c.h.bf16 %v48
    %s51 = scalar_lea.vmem [#allocation1], 104
    %52 = vst [vmem:[%s51] sm:%s4] %v49
    %s53 = smul.addr 4, 12
    %s54 = scalar_lea.vmem %s0, %s53
    %s55 = sshrl.u32 %s4, 1
    %s56 = sor.u32 %s4, %s55
    %s57 = sand.u32 %s56, 85
    %s58 = sshrl.u32 %s57, 1
    %s59 = sor.u32 %s57, %s58
    %s60 = sand.u32 51, %s59
    %s61 = sshrl.u32 %s60, 2
    %s62 = sor.u32 %s60, %s61
    %s63 = sand.u32 15, %s62
    %v64 = vld [vmem:[%s54] sm:%s63]
    %v65 = vunpack.c.l.bf16 %v64
    %v66 = vunpack.c.h.bf16 %v64
    %s67 = scalar_lea.vmem [#allocation1], 96
    %68 = vst [vmem:[%s67] sm:%s4] %v65
    %s69 = smul.addr 4, 11
    %s70 = scalar_lea.vmem %s0, %s69
    %s71 = sshrl.u32 %s4, 1
    %s72 = sor.u32 %s4, %s71
    %s73 = sand.u32 %s72, 85
    %s74 = sshrl.u32 %s73, 1
    %s75 = sor.u32 %s73, %s74
    %s76 = sand.u32 51, %s75
    %s77 = sshrl.u32 %s76, 2
    %s78 = sor.u32 %s76, %s77
    %s79 = sand.u32 15, %s78
    %v80 = vld [vmem:[%s70] sm:%s79]
    %v81 = vunpack.c.l.bf16 %v80
    %v82 = vunpack.c.h.bf16 %v80
    %s83 = scalar_lea.vmem [#allocation1], 88
    %84 = vst [vmem:[%s83] sm:%s4] %v81
    %s85 = smul.addr 4, 10
    %s86 = scalar_lea.vmem %s0, %s85
    %s87 = sshrl.u32 %s4, 1
    %s88 = sor.u32 %s4, %s87
    %s89 = sand.u32 %s88, 85
    %s90 = sshrl.u32 %s89, 1
    %s91 = sor.u32 %s89, %s90
    %s92 = sand.u32 51, %s91
    %s93 = sshrl.u32 %s92, 2
    %s94 = sor.u32 %s92, %s93
    %s95 = sand.u32 15, %s94
    %v96 = vld [vmem:[%s86] sm:%s95]
    %v97 = vunpack.c.l.bf16 %v96
    %v98 = vunpack.c.h.bf16 %v96
    %s99 = scalar_lea.vmem [#allocation1], 80
    %100 = vst [vmem:[%s99] sm:%s4] %v97
    %s101 = smul.addr 4, 9
    %s102 = scalar_lea.vmem %s0, %s101
    %s103 = sshrl.u32 %s4, 1
    %s104 = sor.u32 %s4, %s103
    %s105 = sand.u32 %s104, 85
    %s106 = sshrl.u32 %s105, 1
    %s107 = sor.u32 %s105, %s106
    %s108 = sand.u32 51, %s107
    %s109 = sshrl.u32 %s108, 2
    %s110 = sor.u32 %s108, %s109
    %s111 = sand.u32 15, %s110
    %v112 = vld [vmem:[%s102] sm:%s111]
    %v113 = vunpack.c.l.bf16 %v112
    %v114 = vunpack.c.h.bf16 %v112
    %s115 = scalar_lea.vmem [#allocation1], 72
    %116 = vst [vmem:[%s115] sm:%s4] %v113
    %s117 = smul.addr 4, 8
    %s118 = scalar_lea.vmem %s0, %s117
    %s119 = sshrl.u32 %s4, 1
    %s120 = sor.u32 %s4, %s119
    %s121 = sand.u32 %s120, 85
    %s122 = sshrl.u32 %s121, 1
    %s123 = sor.u32 %s121, %s122
    %s124 = sand.u32 51, %s123
    %s125 = sshrl.u32 %s124, 2
    %s126 = sor.u32 %s124, %s125
    %s127 = sand.u32 15, %s126
    %v128 = vld [vmem:[%s118] sm:%s127]
    %v129 = vunpack.c.l.bf16 %v128
    %v130 = vunpack.c.h.bf16 %v128
    %s131 = scalar_lea.vmem [#allocation1], 64
    %132 = vst [vmem:[%s131] sm:%s4] %v129
    %s133 = smul.addr 4, 7
    %s134 = scalar_lea.vmem %s0, %s133
    %s135 = sshrl.u32 %s4, 1
    %s136 = sor.u32 %s4, %s135
    %s137 = sand.u32 %s136, 85
    %s138 = sshrl.u32 %s137, 1
    %s139 = sor.u32 %s137, %s138
    %s140 = sand.u32 51, %s139
    %s141 = sshrl.u32 %s140, 2
    %s142 = sor.u32 %s140, %s141
    %s143 = sand.u32 15, %s142
    %v144 = vld [vmem:[%s134] sm:%s143]
    %v145 = vunpack.c.l.bf16 %v144
    %v146 = vunpack.c.h.bf16 %v144
    %s147 = scalar_lea.vmem [#allocation1], 56
    %148 = vst [vmem:[%s147] sm:%s4] %v145
    %s149 = smul.addr 4, 6
    %s150 = scalar_lea.vmem %s0, %s149
    %s151 = sshrl.u32 %s4, 1
    %s152 = sor.u32 %s4, %s151
    %s153 = sand.u32 %s152, 85
    %s154 = sshrl.u32 %s153, 1
    %s155 = sor.u32 %s153, %s154
    %s156 = sand.u32 51, %s155
    %s157 = sshrl.u32 %s156, 2
    %s158 = sor.u32 %s156, %s157
    %s159 = sand.u32 15, %s158
    %v160 = vld [vmem:[%s150] sm:%s159]
    %v161 = vunpack.c.l.bf16 %v160
    %v162 = vunpack.c.h.bf16 %v160
    %s163 = scalar_lea.vmem [#allocation1], 48
    %164 = vst [vmem:[%s163] sm:%s4] %v161
    %s165 = smul.addr 4, 5
    %s166 = scalar_lea.vmem %s0, %s165
    %s167 = sshrl.u32 %s4, 1
    %s168 = sor.u32 %s4, %s167
    %s169 = sand.u32 %s168, 85
    %s170 = sshrl.u32 %s169, 1
    %s171 = sor.u32 %s169, %s170
    %s172 = sand.u32 51, %s171
    %s173 = sshrl.u32 %s172, 2
    %s174 = sor.u32 %s172, %s173
    %s175 = sand.u32 15, %s174
    %v176 = vld [vmem:[%s166] sm:%s175]
    %v177 = vunpack.c.l.bf16 %v176
    %v178 = vunpack.c.h.bf16 %v176
    %s179 = scalar_lea.vmem [#allocation1], 40
    %180 = vst [vmem:[%s179] sm:%s4] %v177
    %s181 = smul.addr 4, 4
    %s182 = scalar_lea.vmem %s0, %s181
    %s183 = sshrl.u32 %s4, 1
    %s184 = sor.u32 %s4, %s183
    %s185 = sand.u32 %s184, 85
    %s186 = sshrl.u32 %s185, 1
    %s187 = sor.u32 %s185, %s186
    %s188 = sand.u32 51, %s187
    %s189 = sshrl.u32 %s188, 2
    %s190 = sor.u32 %s188, %s189
    %s191 = sand.u32 15, %s190
    %v192 = vld [vmem:[%s182] sm:%s191]
    %v193 = vunpack.c.l.bf16 %v192
    %v194 = vunpack.c.h.bf16 %v192
    %s195 = scalar_lea.vmem [#allocation1], 32
    %196 = vst [vmem:[%s195] sm:%s4] %v193
    %s197 = smul.addr 4, 3
    %s198 = scalar_lea.vmem %s0, %s197
    %s199 = sshrl.u32 %s4, 1
    %s200 = sor.u32 %s4, %s199
    %s201 = sand.u32 %s200, 85
    %s202 = sshrl.u32 %s201, 1
    %s203 = sor.u32 %s201, %s202
    %s204 = sand.u32 51, %s203
    %s205 = sshrl.u32 %s204, 2
    %s206 = sor.u32 %s204, %s205
    %s207 = sand.u32 15, %s206
    %v208 = vld [vmem:[%s198] sm:%s207]
    %v209 = vunpack.c.l.bf16 %v208
    %v210 = vunpack.c.h.bf16 %v208
    %s211 = scalar_lea.vmem [#allocation1], 24
    %212 = vst [vmem:[%s211] sm:%s4] %v209
    %s213 = smul.addr 4, 2
    %s214 = scalar_lea.vmem %s0, %s213
    %s215 = sshrl.u32 %s4, 1
    %s216 = sor.u32 %s4, %s215
    %s217 = sand.u32 %s216, 85
    %s218 = sshrl.u32 %s217, 1
    %s219 = sor.u32 %s217, %s218
    %s220 = sand.u32 51, %s219
    %s221 = sshrl.u32 %s220, 2
    %s222 = sor.u32 %s220, %s221
    %s223 = sand.u32 15, %s222
    %v224 = vld [vmem:[%s214] sm:%s223]
    %v225 = vunpack.c.l.bf16 %v224
    %v226 = vunpack.c.h.bf16 %v224
    %s227 = scalar_lea.vmem [#allocation1], 16
    %228 = vst [vmem:[%s227] sm:%s4] %v225
    %s229 = scalar_lea.vmem %s0, 4
    %s230 = sshrl.u32 %s4, 1
    %s231 = sor.u32 %s4, %s230
    %s232 = sand.u32 %s231, 85
    %s233 = sshrl.u32 %s232, 1
    %s234 = sor.u32 %s232, %s233
    %s235 = sand.u32 51, %s234
    %s236 = sshrl.u32 %s235, 2
    %s237 = sor.u32 %s235, %s236
    %s238 = sand.u32 15, %s237
    %v239 = vld [vmem:[%s229] sm:%s238]
    %v240 = vunpack.c.l.bf16 %v239
    %v241 = vunpack.c.h.bf16 %v239
    %s242 = scalar_lea.vmem [#allocation1], 8
    %243 = vst [vmem:[%s242] sm:%s4] %v240
    %s244 = sshrl.u32 %s4, 1
    %s245 = sor.u32 %s4, %s244
    %s246 = sand.u32 %s245, 85
    %s247 = sshrl.u32 %s246, 1
    %s248 = sor.u32 %s246, %s247
    %s249 = sand.u32 51, %s248
    %s250 = sshrl.u32 %s249, 2
    %s251 = sor.u32 %s249, %s250
    %s252 = sand.u32 15, %s251
    %v253 = vld [vmem:[%s0] sm:%s252]
    %v254 = vunpack.c.l.bf16 %v253
    %v255 = vunpack.c.h.bf16 %v253
    %256 = vst [vmem:[#allocation1] sm:%s4] %v254
    %v257 = vld [vmem:[#allocation1] ss:$8 sm:$0xf]
    %v258 = vld [vmem:[#allocation1] ss:$8 sm:$0xf0]
    %vm259 = vcmask 1047556
    %v260 = vsel %vm259, %v258, %v257
    %vm261 = vcmask 130048
    %262 = vst.msk [vmem:[#allocation0] sm:$0xff] %vm261, %v260
    %s263 = scalar_lea.vmem [#allocation1], 64
    %v264 = vld [vmem:[%s263] ss:$8 sm:$0xf]
    %s265 = scalar_lea.vmem [#allocation1], 64
    %v266 = vld [vmem:[%s265] ss:$8 sm:$0xf0]
    %vm267 = vcmask 1047556
    %v268 = vsel %vm267, %v266, %v264
    %vm269 = vcmask 130048
    %s270 = scalar_lea.vmem [#allocation0], 8
    %271 = vst.msk [vmem:[%s270] sm:$0xff] %vm269, %v268
    %s272 = scalar_lea.vmem [#allocation1], 7
    %v273 = vld [vmem:[%s272] ss:$8 sm:$0xf]
    %s274 = scalar_lea.vmem [#allocation1], 7
    %v275 = vld [vmem:[%s274] ss:$8 sm:$0xf0]
    %vm276 = vcmask 1047556
    %v277 = vsel %vm276, %v275, %v273
    %278 = vrot.lane.b32.xlu0 %v277, 112
    %v279 = vpop.permute.xlu0 %278
    %vm280 = vcmask 1048448
    %281 = vst.msk [vmem:[#allocation0] sm:$0xff] %vm280, %v279
    %s282 = scalar_lea.vmem [#allocation1], 71
    %v283 = vld [vmem:[%s282] ss:$8 sm:$0xf]
    %s284 = scalar_lea.vmem [#allocation1], 71
    %v285 = vld [vmem:[%s284] ss:$8 sm:$0xf0]
    %vm286 = vcmask 1047556
    %v287 = vsel %vm286, %v285, %v283
    %288 = vrot.lane.b32.xlu0 %v287, 112
    %v289 = vpop.permute.xlu0 %288
    %vm290 = vcmask 1048448
    %s291 = scalar_lea.vmem [#allocation0], 8
    %292 = vst.msk [vmem:[%s291] sm:$0xff] %vm290, %v289
    %s293 = scalar_lea.vmem [#allocation1], 6
    %v294 = vld [vmem:[%s293] ss:$8 sm:$0xf]
    %s295 = scalar_lea.vmem [#allocation1], 6
    %v296 = vld [vmem:[%s295] ss:$8 sm:$0xf0]
    %vm297 = vcmask 1047556
    %v298 = vsel %vm297, %v296, %v294
    %299 = vrot.lane.b32.xlu0 %v298, 96
    %v300 = vpop.permute.xlu0 %299
    %vm301 = vcmask 917248
    %302 = vst.msk [vmem:[#allocation0] sm:$0xff] %vm301, %v300
    %s303 = scalar_lea.vmem [#allocation1], 70
    %v304 = vld [vmem:[%s303] ss:$8 sm:$0xf]
    %s305 = scalar_lea.vmem [#allocation1], 70
    %v306 = vld [vmem:[%s305] ss:$8 sm:$0xf0]
    %vm307 = vcmask 1047556
    %v308 = vsel %vm307, %v306, %v304
    %309 = vrot.lane.b32.xlu0 %v308, 96
    %v310 = vpop.permute.xlu0 %309
    %vm311 = vcmask 917248
    %s312 = scalar_lea.vmem [#allocation0], 8
    %313 = vst.msk [vmem:[%s312] sm:$0xff] %vm311, %v310
    %s314 = scalar_lea.vmem [#allocation1], 5
    %v315 = vld [vmem:[%s314] ss:$8 sm:$0xf]
    %s316 = scalar_lea.vmem [#allocation1], 5
    %v317 = vld [vmem:[%s316] ss:$8 sm:$0xf0]
    %vm318 = vcmask 1047556
    %v319 = vsel %vm318, %v317, %v315
    %320 = vrot.lane.b32.xlu0 %v319, 80
    %v321 = vpop.permute.xlu0 %320
    %vm322 = vcmask 786048
    %323 = vst.msk [vmem:[#allocation0] sm:$0xff] %vm322, %v321
    %s324 = scalar_lea.vmem [#allocation1], 69
    %v325 = vld [vmem:[%s324] ss:$8 sm:$0xf]
    %s326 = scalar_lea.vmem [#allocation1], 69
    %v327 = vld [vmem:[%s326] ss:$8 sm:$0xf0]
    %vm328 = vcmask 1047556
    %v329 = vsel %vm328, %v327, %v325
    %330 = vrot.lane.b32.xlu0 %v329, 80
    %v331 = vpop.permute.xlu0 %330
    %vm332 = vcmask 786048
    %s333 = scalar_lea.vmem [#allocation0], 8
    %334 = vst.msk [vmem:[%s333] sm:$0xff] %vm332, %v331
    %s335 = scalar_lea.vmem [#allocation1], 4
    %v336 = vld [vmem:[%s335] ss:$8 sm:$0xf]
    %s337 = scalar_lea.vmem [#allocation1], 4
    %v338 = vld [vmem:[%s337] ss:$8 sm:$0xf0]
    %vm339 = vcmask 1047556
    %v340 = vsel %vm339, %v338, %v336
    %341 = vrot.lane.b32.xlu0 %v340, 64
    %v342 = vpop.permute.xlu0 %341
    %vm343 = vcmask 654848
    %344 = vst.msk [vmem:[#allocation0] sm:$0xff] %vm343, %v342
    %s345 = scalar_lea.vmem [#allocation1], 68
    %v346 = vld [vmem:[%s345] ss:$8 sm:$0xf]
    %s347 = scalar_lea.vmem [#allocation1], 68
    %v348 = vld [vmem:[%s347] ss:$8 sm:$0xf0]
    %vm349 = vcmask 1047556
    %v350 = vsel %vm349, %v348, %v346
    %351 = vrot.lane.b32.xlu0 %v350, 64
    %v352 = vpop.permute.xlu0 %351
    %vm353 = vcmask 654848
    %s354 = scalar_lea.vmem [#allocation0], 8
    %355 = vst.msk [vmem:[%s354] sm:$0xff] %vm353, %v352
    %s356 = scalar_lea.vmem [#allocation1], 3
    %v357 = vld [vmem:[%s356] ss:$8 sm:$0xf]
    %s358 = scalar_lea.vmem [#allocation1], 3
    %v359 = vld [vmem:[%s358] ss:$8 sm:$0xf0]
    %vm360 = vcmask 1047556
    %v361 = vsel %vm360, %v359, %v357
    %362 = vrot.lane.b32.xlu0 %v361, 48
    %v363 = vpop.permute.xlu0 %362
    %vm364 = vcmask 523648
    %365 = vst.msk [vmem:[#allocation0] sm:$0xff] %vm364, %v363
    %s366 = scalar_lea.vmem [#allocation1], 67
    %v367 = vld [vmem:[%s366] ss:$8 sm:$0xf]
    %s368 = scalar_lea.vmem [#allocation1], 67
    %v369 = vld [vmem:[%s368] ss:$8 sm:$0xf0]
    %vm370 = vcmask 1047556
    %v371 = vsel %vm370, %v369, %v367
    %372 = vrot.lane.b32.xlu0 %v371, 48
    %v373 = vpop.permute.xlu0 %372
    %vm374 = vcmask 523648
    %s375 = scalar_lea.vmem [#allocation0], 8
    %376 = vst.msk [vmem:[%s375] sm:$0xff] %vm374, %v373
    %s377 = scalar_lea.vmem [#allocation1], 2
    %v378 = vld [vmem:[%s377] ss:$8 sm:$0xf]
    %s379 = scalar_lea.vmem [#allocation1], 2
    %v380 = vld [vmem:[%s379] ss:$8 sm:$0xf0]
    %vm381 = vcmask 1047556
    %v382 = vsel %vm381, %v380, %v378
    %383 = vrot.lane.b32.xlu0 %v382, 32
    %v384 = vpop.permute.xlu0 %383
    %vm385 = vcmask 392448
    %386 = vst.msk [vmem:[#allocation0] sm:$0xff] %vm385, %v384
    %s387 = scalar_lea.vmem [#allocation1], 66
    %v388 = vld [vmem:[%s387] ss:$8 sm:$0xf]
    %s389 = scalar_lea.vmem [#allocation1], 66
    %v390 = vld [vmem:[%s389] ss:$8 sm:$0xf0]
    %vm391 = vcmask 1047556
    %v392 = vsel %vm391, %v390, %v388
    %393 = vrot.lane.b32.xlu0 %v392, 32
    %v394 = vpop.permute.xlu0 %393
    %vm395 = vcmask 392448
    %s396 = scalar_lea.vmem [#allocation0], 8
    %397 = vst.msk [vmem:[%s396] sm:$0xff] %vm395, %v394
    %s398 = scalar_lea.vmem [#allocation1], 1
    %v399 = vld [vmem:[%s398] ss:$8 sm:$0xf]
    %s400 = scalar_lea.vmem [#allocation1], 1
    %v401 = vld [vmem:[%s400] ss:$8 sm:$0xf0]
    %vm402 = vcmask 1047556
    %v403 = vsel %vm402, %v401, %v399
    %404 = vrot.lane.b32.xlu0 %v403, 16
    %v405 = vpop.permute.xlu0 %404
    %vm406 = vcmask 261248
    %407 = vst.msk [vmem:[#allocation0] sm:$0xff] %vm406, %v405
    %s408 = scalar_lea.vmem [#allocation1], 65
    %v409 = vld [vmem:[%s408] ss:$8 sm:$0xf]
    %s410 = scalar_lea.vmem [#allocation1], 65
    %v411 = vld [vmem:[%s410] ss:$8 sm:$0xf0]
    %vm412 = vcmask 1047556
    %v413 = vsel %vm412, %v411, %v409
    %414 = vrot.lane.b32.xlu0 %v413, 16
    %v415 = vpop.permute.xlu0 %414
    %vm416 = vcmask 261248
    %s417 = scalar_lea.vmem [#allocation0], 8
    %418 = vst.msk [vmem:[%s417] sm:$0xff] %vm416, %v415
    %s420 = smul.u32 4, 2
    %s421 = sshllo.u32 0, %s420
    %s422 = sshrl.u32 %s420, 1
    %v423 = vld [vmem:[#allocation0] sm:%s421]
    %v424 = vpack.c.bf16 0.0, %v423
    %s425 = sshllo.u32 0, %s422
    %426 = vst [vmem:[%s1] sm:%s425] %v424
    %s427 = scalar_lea.vmem [#allocation0], 8
    %v428 = vld [vmem:[%s427] sm:%s421]
    %v429 = vpack.c.bf16 0.0, %v428
    %s430 = sshllo.u32 0, %s422
    %s431 = scalar_lea.vmem %s1, 4
    %432 = vst [vmem:[%s431] sm:%s430] %v429

// kernel: entity_linking_forward_pallas.1
$region0: #{entity_linking_forward_pallas.1}
  #allocation0 [shape = 'u32[]', space=smem, size = 0x4, offset = 0x4, fixed_abs, tag = 'smem constant byte address 0x4 - core index']
  #allocation1 [shape = 'u32[144,128]{1,0:T(1,128)}', space=vmem, size = 0x12000, scoped, tag = 'internal scratch']
  #allocation2 [shape = 'f32[64,32]{1,0:T(8,128)}', space=vmem, size = 0x8000, scoped, tag = 'scratch operand']
  #allocation3 [shape = 'f32[16,128]{1,0:T(8,128)}', space=vmem, size = 0x2000, scoped, tag = 'scratch operand']
  #allocation4 [shape = 'f32[16,128]{1,0:T(8,128)}', space=vmem, size = 0x2000, scoped, tag = 'scratch operand']
  %s0 = inlined_call_operand.vmem [shape: bf16[64,128], index: 0, kind: input, shape index: {}]
  %s1 = inlined_call_operand.vmem [shape: bf16[128,1024], index: 1, kind: input, shape index: {}]
  %s2 = inlined_call_operand.vmem [shape: f32[1,1024], index: 2, kind: input, shape index: {}]
  %s3 = inlined_call_operand.vmem [shape: bf16[1024,32], index: 3, kind: input, shape index: {}]
  %s4 = inlined_call_operand.vmem [shape: bf16[16,128], index: 4, kind: input, shape index: {}]
  %s5 = inlined_call_operand.vmem [shape: bf16[128,448], index: 5, kind: input, shape index: {}]
  %s6 = inlined_call_operand.vmem [shape: f32[8,128], index: 6, kind: input, shape index: {}]
  %s7 = inlined_call_operand.vmem [shape: f32[16,1], index: 7, kind: output, shape index: {}]
  %s8 = sld [smem:[#allocation0]]
  $region96: #{entity_linking_forward_pallas.1} parent=0
    _
  %s10 = ssub.s32 1, %s8
  %s11 = scalar_select 0, %s10, %s8
  $region1: #{entity_linking_forward_pallas.1} parent=0
    #allocation5 [shape = 'u8[262144]{0}', space=vmem, size = 0x40000, scoped, tag = 'input window, operand 1']
    loop: start=0, step=1, limit=4
    $region2: #{entity_linking_forward_pallas.1} parent=1 // loop_pre_header
      _
    $region3: #{entity_linking_forward_pallas.1} parent=1 // loop_header
      %s13 = sphi 0, %s17
      %p14 = scmp.ge.s32.totalorder %s13, 4
      %s21 = sphi 0, %s21
      %s23 = sphi 0, %s21
      %s24 = sphi 0, %s23
      %s38 = sphi 0, %s24
      %s44 = sphi 0, %s46
      %s47 = sphi 0, %s44
      %s48 = sphi 0, %s47
      %s64 = sphi 0, %s48
      %s70 = sphi 0, %s72
      %s73 = sphi 0, %s70
      %s74 = sphi 0, %s73
      %s90 = sphi 0, %s74
      %s96 = sphi 0, %s98
      %s99 = sphi 0, %s96
      %s100 = sphi 0, %s99
      %s116 = sphi 0, %s100
      %s120 = sphi 0, %s120
      %s122 = sphi 0, %s120
      %s123 = sphi 0, %s122
      %s137 = sphi 0, %s123
      %s141 = sphi 0, %s141
      %s143 = sphi 0, %s141
      %s144 = sphi 0, %s143
      %s158 = sphi 0, %s144
      %s162 = sphi 0, %s162
      %s164 = sphi 0, %s162
      %s165 = sphi 0, %s164
      %s179 = sphi 0, %s165
      %s183 = sphi 0, %s183
      %s185 = sphi 0, %s183
      %s186 = sphi 0, %s185
      %s200 = sphi 0, %s186
    $region4: #{entity_linking_forward_pallas.1} parent=1 // loop_header_branch
      %16 = sbr.rel (%p14) target = $region8
    $region5: #{entity_linking_forward_pallas.1} parent=1 // loop_body
      %s18 = ssub.s32 %s13, 1
      %s19 = ssub.s32 %s13, 2
      %s20 = sadd.s32 %s13, 1
      %s22 = sadd.s32 %s21, 1
      %p25 = scmp.eq.s32.totalorder %s13, 1
      %p26 = scmp.ne.s32.totalorder %s21, %s23
      %p27 = scmp.eq.s32.totalorder %s13, 0
      %p28 = por %p26, %p27
      %p29 = scmp.ne.s32.totalorder %s21, %s23
      %p30 = scmp.eq.s32.totalorder %s18, 1
      %p31 = por %p29, %p30
      %p32 = scmp.ne.s32.totalorder %s23, %s24
      %p33 = scmp.eq.s32.totalorder %s18, 0
      %p34 = por %p32, %p33
      %p35 = scmp.ne.s32.totalorder %s23, %s24
      %p36 = scmp.eq.s32.totalorder %s19, 1
      %p37 = por %p35, %p36
      %p39 = scmp.ne.s32.totalorder %s24, %s38
      %p40 = scmp.eq.s32.totalorder %s19, 0
      %p41 = por %p39, %p40
      %s42 = ssub.s32 %s13, %s20
      %p43 = scmp.eq.s32.totalorder %s42, 0
      %s45 = sadd.s32 %s44, 1
      %s46 = scalar_select %p43, %s44, %s45
      %p49 = pneg %p43
      %p50 = scmp.eq.s32.totalorder %s13, 1
      %p51 = por %p49, %p50
      %p52 = scmp.ne.s32.totalorder %s44, %s47
      %p53 = scmp.eq.s32.totalorder %s13, 0
      %p54 = por %p52, %p53
      %p55 = scmp.ne.s32.totalorder %s44, %s47
      %p56 = scmp.eq.s32.totalorder %s18, 1
      %p57 = por %p55, %p56
      %p58 = scmp.ne.s32.totalorder %s47, %s48
      %p59 = scmp.eq.s32.totalorder %s18, 0
      %p60 = por %p58, %p59
      %p61 = scmp.ne.s32.totalorder %s47, %s48
      %p62 = scmp.eq.s32.totalorder %s19, 1
      %p63 = por %p61, %p62
      %p65 = scmp.ne.s32.totalorder %s48, %s64
      %p66 = scmp.eq.s32.totalorder %s19, 0
      %p67 = por %p65, %p66
      %s68 = ssub.s32 %s13, %s20
      %p69 = scmp.eq.s32.totalorder %s68, 0
      %s71 = sadd.s32 %s70, 1
      %s72 = scalar_select %p69, %s70, %s71
      %p75 = pneg %p69
      %p76 = scmp.eq.s32.totalorder %s13, 1
      %p77 = por %p75, %p76
      %p78 = scmp.ne.s32.totalorder %s70, %s73
      %p79 = scmp.eq.s32.totalorder %s13, 0
      %p80 = por %p78, %p79
      %p81 = scmp.ne.s32.totalorder %s70, %s73
      %p82 = scmp.eq.s32.totalorder %s18, 1
      %p83 = por %p81, %p82
      %p84 = scmp.ne.s32.totalorder %s73, %s74
      %p85 = scmp.eq.s32.totalorder %s18, 0
      %p86 = por %p84, %p85
      %p87 = scmp.ne.s32.totalorder %s73, %s74
      %p88 = scmp.eq.s32.totalorder %s19, 1
      %p89 = por %p87, %p88
      %p91 = scmp.ne.s32.totalorder %s74, %s90
      %p92 = scmp.eq.s32.totalorder %s19, 0
      %p93 = por %p91, %p92
      %s94 = ssub.s32 %s13, %s20
      %p95 = scmp.eq.s32.totalorder %s94, 0
      %s97 = sadd.s32 %s96, 1
      %s98 = scalar_select %p95, %s96, %s97
      %p101 = pneg %p95
      %p102 = scmp.eq.s32.totalorder %s13, 1
      %p103 = por %p101, %p102
      %p104 = scmp.ne.s32.totalorder %s96, %s99
      %p105 = scmp.eq.s32.totalorder %s13, 0
      %p106 = por %p104, %p105
      %p107 = scmp.ne.s32.totalorder %s96, %s99
      %p108 = scmp.eq.s32.totalorder %s18, 1
      %p109 = por %p107, %p108
      %p110 = scmp.ne.s32.totalorder %s99, %s100
      %p111 = scmp.eq.s32.totalorder %s18, 0
      %p112 = por %p110, %p111
      %p113 = scmp.ne.s32.totalorder %s99, %s100
      %p114 = scmp.eq.s32.totalorder %s19, 1
      %p115 = por %p113, %p114
      %p117 = scmp.ne.s32.totalorder %s100, %s116
      %p118 = scmp.eq.s32.totalorder %s19, 0
      %p119 = por %p117, %p118
      %s121 = sadd.s32 %s120, 1
      %p124 = scmp.eq.s32.totalorder %s13, 1
      %p125 = scmp.ne.s32.totalorder %s120, %s122
      %p126 = scmp.eq.s32.totalorder %s13, 0
      %p127 = por %p125, %p126
      %p128 = scmp.ne.s32.totalorder %s120, %s122
      %p129 = scmp.eq.s32.totalorder %s18, 1
      %p130 = por %p128, %p129
      %p131 = scmp.ne.s32.totalorder %s122, %s123
      %p132 = scmp.eq.s32.totalorder %s18, 0
      %p133 = por %p131, %p132
      %p134 = scmp.ne.s32.totalorder %s122, %s123
      %p135 = scmp.eq.s32.totalorder %s19, 1
      %p136 = por %p134, %p135
      %p138 = scmp.ne.s32.totalorder %s123, %s137
      %p139 = scmp.eq.s32.totalorder %s19, 0
      %p140 = por %p138, %p139
      %s142 = sadd.s32 %s141, 1
      %p145 = scmp.eq.s32.totalorder %s13, 1
      %p146 = scmp.ne.s32.totalorder %s141, %s143
      %p147 = scmp.eq.s32.totalorder %s13, 0
      %p148 = por %p146, %p147
      %p149 = scmp.ne.s32.totalorder %s141, %s143
      %p150 = scmp.eq.s32.totalorder %s18, 1
      %p151 = por %p149, %p150
      %p152 = scmp.ne.s32.totalorder %s143, %s144
      %p153 = scmp.eq.s32.totalorder %s18, 0
      %p154 = por %p152, %p153
      %p155 = scmp.ne.s32.totalorder %s143, %s144
      %p156 = scmp.eq.s32.totalorder %s19, 1
      %p157 = por %p155, %p156
      %p159 = scmp.ne.s32.totalorder %s144, %s158
      %p160 = scmp.eq.s32.totalorder %s19, 0
      %p161 = por %p159, %p160
      %s163 = sadd.s32 %s162, 1
      %p166 = scmp.eq.s32.totalorder %s13, 1
      %p167 = scmp.ne.s32.totalorder %s162, %s164
      %p168 = scmp.eq.s32.totalorder %s13, 0
      %p169 = por %p167, %p168
      %p170 = scmp.ne.s32.totalorder %s162, %s164
      %p171 = scmp.eq.s32.totalorder %s18, 1
      %p172 = por %p170, %p171
      %p173 = scmp.ne.s32.totalorder %s164, %s165
      %p174 = scmp.eq.s32.totalorder %s18, 0
      %p175 = por %p173, %p174
      %p176 = scmp.ne.s32.totalorder %s164, %s165
      %p177 = scmp.eq.s32.totalorder %s19, 1
      %p178 = por %p176, %p177
      %p180 = scmp.ne.s32.totalorder %s165, %s179
      %p181 = scmp.eq.s32.totalorder %s19, 0
      %p182 = por %p180, %p181
      %s184 = sadd.s32 %s183, 1
      %p187 = scmp.eq.s32.totalorder %s13, 1
      %p188 = scmp.ne.s32.totalorder %s183, %s185
      %p189 = scmp.eq.s32.totalorder %s13, 0
      %p190 = por %p188, %p189
      %p191 = scmp.ne.s32.totalorder %s183, %s185
      %p192 = scmp.eq.s32.totalorder %s18, 1
      %p193 = por %p191, %p192
      %p194 = scmp.ne.s32.totalorder %s185, %s186
      %p195 = scmp.eq.s32.totalorder %s18, 0
      %p196 = por %p194, %p195
      %p197 = scmp.ne.s32.totalorder %s185, %s186
      %p198 = scmp.eq.s32.totalorder %s19, 1
      %p199 = por %p197, %p198
      %p201 = scmp.ne.s32.totalorder %s186, %s200
      %p202 = scmp.eq.s32.totalorder %s19, 0
      %p203 = por %p201, %p202
      %p204 = scmp.le.s32.totalorder 1, %s13
      %p205 = scmp.lt.s32.totalorder %s13, 3
      %p206 = pnand %p204, %p205
      %p207 = pneg %p206
      // Predicated region
      $region9: #{entity_linking_forward_pallas.1} parent=5 // pred_check
        _
      $region10: #{entity_linking_forward_pallas.1} parent=5 // pred_check_branch
        %209 = sbr.rel (%p206) target = $region12
      $region11: #{entity_linking_forward_pallas.1} parent=5 // pred_region
        %s210 = ssub.s32 %s13, 1
        // Predicated region
        $region13: #{entity_linking_forward_pallas.1} parent=11 // pred_check
          %p211 = pneg %p34
        $region14: #{entity_linking_forward_pallas.1} parent=11 // pred_check_branch
          %213 = sbr.rel (%p211) target = $region16
        $region15: #{entity_linking_forward_pallas.1} parent=11 // pred_region
          _
        $region16: #{entity_linking_forward_pallas.1} parent=11 // pred_fallthru
          _
        // Predicated region
        $region17: #{entity_linking_forward_pallas.1} parent=11 // pred_check
          %p214 = pneg %p133
        $region18: #{entity_linking_forward_pallas.1} parent=11 // pred_check_branch
          %216 = sbr.rel (%p214) target = $region20
        $region19: #{entity_linking_forward_pallas.1} parent=11 // pred_region
          _
        $region20: #{entity_linking_forward_pallas.1} parent=11 // pred_fallthru
          _
        // Predicated region
        $region21: #{entity_linking_forward_pallas.1} parent=11 // pred_check
          %p217 = pneg %p154
        $region22: #{entity_linking_forward_pallas.1} parent=11 // pred_check_branch
          %219 = sbr.rel (%p217) target = $region24
        $region23: #{entity_linking_forward_pallas.1} parent=11 // pred_region
          _
        $region24: #{entity_linking_forward_pallas.1} parent=11 // pred_fallthru
          _
        // Predicated region
        $region25: #{entity_linking_forward_pallas.1} parent=11 // pred_check
          %p220 = pneg %p175
        $region26: #{entity_linking_forward_pallas.1} parent=11 // pred_check_branch
          %222 = sbr.rel (%p220) target = $region28
        $region27: #{entity_linking_forward_pallas.1} parent=11 // pred_region
          _
        $region28: #{entity_linking_forward_pallas.1} parent=11 // pred_fallthru
          _
      $region12: #{entity_linking_forward_pallas.1} parent=5 // pred_fallthru
        _
      %p223 = scmp.lt.s32.totalorder %s13, 2
      // Predicated region
      $region29: #{entity_linking_forward_pallas.1} parent=5 // pred_check
        %p224 = pneg %p223
      $region30: #{entity_linking_forward_pallas.1} parent=5 // pred_check_branch
        %226 = sbr.rel (%p224) target = $region32
      $region31: #{entity_linking_forward_pallas.1} parent=5 // pred_region
        // Predicated region
        $region33: #{entity_linking_forward_pallas.1} parent=31 // pred_check
          %p227 = pneg %p54
        $region34: #{entity_linking_forward_pallas.1} parent=31 // pred_check_branch
          %229 = sbr.rel (%p227) target = $region36
        $region35: #{entity_linking_forward_pallas.1} parent=31 // pred_region
          %s230 = sand.u32 %s44, 1
          %s231 = sand.u32 %s44, 1
          %s232 = smul.addr %s231, 256
          %s233 = scalar_lea.vmem [#allocation5], %s232
          %s234 = smul.u32 4, %s13
          %s235 = smul.addr %s234, 4
          %s236 = scalar_lea.vmem %s1, %s235
          // Predicated region
          $region37: #{entity_linking_forward_pallas.1} parent=35 // pred_check
            _
          $region38: #{entity_linking_forward_pallas.1} parent=35 // pred_check_branch
            %238 = sbr.rel (0) target = $region40
          $region39: #{entity_linking_forward_pallas.1} parent=35 // pred_region
            // Predicated region
            $region41: #{entity_linking_forward_pallas.1} parent=39 // pred_check
              _
            $region42: #{entity_linking_forward_pallas.1} parent=39 // pred_check_branch
              %240 = sbr.rel (0) target = $region44
            $region43: #{entity_linking_forward_pallas.1} parent=39 // pred_region
              loop: start=0, step=1, limit=1
              $region45: #{entity_linking_forward_pallas.1} parent=43 // loop_pre_header
                _
              $region46: #{entity_linking_forward_pallas.1} parent=43 // loop_header
                %s242 = sphi 0, %s246
                %p243 = scmp.ge.s32.totalorder %s242, 1
                %s247 = sphi %s236, %s236
                %s248 = sphi %s233, %s233
              $region47: #{entity_linking_forward_pallas.1} parent=43 // loop_header_branch
                %245 = sbr.rel (%p243) target = $region51
              $region48: #{entity_linking_forward_pallas.1} parent=43 // loop_body
                %v249 = vld [vmem:[%s247] sm:$0xff]
                %250 = vst [vmem:[%s248] sm:$0xff] %v249
                %v251 = vld [vmem:[%s247 + $0x8] sm:$0xff]
                %252 = vst [vmem:[%s248 + $0x8] sm:$0xff] %v251
                %v253 = vld [vmem:[%s247 + $0x20] sm:$0xff]
                %254 = vst [vmem:[%s248 + $0x10] sm:$0xff] %v253
                %v255 = vld [vmem:[%s247 + $0x28] sm:$0xff]
                %256 = vst [vmem:[%s248 + $0x18] sm:$0xff] %v255
                %v257 = vld [vmem:[%s247 + $0x40] sm:$0xff]
                %258 = vst [vmem:[%s248 + $0x20] sm:$0xff] %v257
                %v259 = vld [vmem:[%s247 + $0x48] sm:$0xff]
                %260 = vst [vmem:[%s248 + $0x28] sm:$0xff] %v259
                %v261 = vld [vmem:[%s247 + $0x60] sm:$0xff]
                %262 = vst [vmem:[%s248 + $0x30] sm:$0xff] %v261
                %v263 = vld [vmem:[%s247 + $0x68] sm:$0xff]
                %264 = vst [vmem:[%s248 + $0x38] sm:$0xff] %v263
                %v265 = vld [vmem:[%s247 + $0x80] sm:$0xff]
                %266 = vst [vmem:[%s248 + $0x40] sm:$0xff] %v265
                %v267 = vld [vmem:[%s247 + $0x88] sm:$0xff]
                %268 = vst [vmem:[%s248 + $0x48] sm:$0xff] %v267
                %v269 = vld [vmem:[%s247 + $0xa0] sm:$0xff]
                %270 = vst [vmem:[%s248 + $0x50] sm:$0xff] %v269
                %v271 = vld [vmem:[%s247 + $0xa8] sm:$0xff]
                %272 = vst [vmem:[%s248 + $0x58] sm:$0xff] %v271
                %v273 = vld [vmem:[%s247 + $0xc0] sm:$0xff]
                %274 = vst [vmem:[%s248 + $0x60] sm:$0xff] %v273
                %v275 = vld [vmem:[%s247 + $0xc8] sm:$0xff]
                %276 = vst [vmem:[%s248 + $0x68] sm:$0xff] %v275
                %v277 = vld [vmem:[%s247 + $0xe0] sm:$0xff]
                %278 = vst [vmem:[%s248 + $0x70] sm:$0xff] %v277
                %v279 = vld [vmem:[%s247 + $0xe8] sm:$0xff]
                %280 = vst [vmem:[%s248 + $0x78] sm:$0xff] %v279
                %v281 = vld [vmem:[%s247 + $0x100] sm:$0xff]
                %282 = vst [vmem:[%s248 + $0x80] sm:$0xff] %v281
                %v283 = vld [vmem:[%s247 + $0x108] sm:$0xff]
                %284 = vst [vmem:[%s248 + $0x88] sm:$0xff] %v283
                %v285 = vld [vmem:[%s247 + $0x120] sm:$0xff]
                %286 = vst [vmem:[%s248 + $0x90] sm:$0xff] %v285
                %v287 = vld [vmem:[%s247 + $0x128] sm:$0xff]
                %288 = vst [vmem:[%s248 + $0x98] sm:$0xff] %v287
                %v289 = vld [vmem:[%s247 + $0x140] sm:$0xff]
                %290 = vst [vmem:[%s248 + $0xa0] sm:$0xff] %v289
                %v291 = vld [vmem:[%s247 + $0x148] sm:$0xff]
                %292 = vst [vmem:[%s248 + $0xa8] sm:$0xff] %v291
                %v293 = vld [vmem:[%s247 + $0x160] sm:$0xff]
                %294 = vst [vmem:[%s248 + $0xb0] sm:$0xff] %v293
                %v295 = vld [vmem:[%s247 + $0x168] sm:$0xff]
                %296 = vst [vmem:[%s248 + $0xb8] sm:$0xff] %v295
                %v297 = vld [vmem:[%s247 + $0x180] sm:$0xff]
                %298 = vst [vmem:[%s248 + $0xc0] sm:$0xff] %v297
                %v299 = vld [vmem:[%s247 + $0x188] sm:$0xff]
                %300 = vst [vmem:[%s248 + $0xc8] sm:$0xff] %v299
                %v301 = vld [vmem:[%s247 + $0x1a0] sm:$0xff]
                %302 = vst [vmem:[%s248 + $0xd0] sm:$0xff] %v301
                %v303 = vld [vmem:[%s247 + $0x1a8] sm:$0xff]
                %304 = vst [vmem:[%s248 + $0xd8] sm:$0xff] %v303
                %v305 = vld [vmem:[%s247 + $0x1c0] sm:$0xff]
                %306 = vst [vmem:[%s248 + $0xe0] sm:$0xff] %v305
                %v307 = vld [vmem:[%s247 + $0x1c8] sm:$0xff]
                %308 = vst [vmem:[%s248 + $0xe8] sm:$0xff] %v307
                %v309 = vld [vmem:[%s247 + $0x1e0] sm:$0xff]
                %310 = vst [vmem:[%s248 + $0xf0] sm:$0xff] %v309
                %v311 = vld [vmem:[%s247 + $0x1e8] sm:$0xff]
                %312 = vst [vmem:[%s248 + $0xf8] sm:$0xff] %v311
              $region49: #{entity_linking_forward_pallas.1} parent=43 // loop_footer
                %s246 = sadd.s32 1, %s242
              $region50: #{entity_linking_forward_pallas.1} parent=43 // loop_footer_branch
                %241 = sbr.rel target = $region46
              $region51: #{entity_linking_forward_pallas.1} parent=43 // loop_exit
                _
            $region44: #{entity_linking_forward_pallas.1} parent=39 // pred_fallthru
              _
            // Predicated region
            $region52: #{entity_linking_forward_pallas.1} parent=39 // pred_check
              _
            $region53: #{entity_linking_forward_pallas.1} parent=39 // pred_check_branch
              %314 = sbr.rel target = $region55
            $region54: #{entity_linking_forward_pallas.1} parent=39 // pred_region
              _
            $region55: #{entity_linking_forward_pallas.1} parent=39 // pred_fallthru
              _
          $region40: #{entity_linking_forward_pallas.1} parent=35 // pred_fallthru
            _
          %315 = vnop
        $region36: #{entity_linking_forward_pallas.1} parent=31 // pred_fallthru
          _
        // Predicated region
        $region56: #{entity_linking_forward_pallas.1} parent=31 // pred_check
          %p316 = pneg %p80
        $region57: #{entity_linking_forward_pallas.1} parent=31 // pred_check_branch
          %318 = sbr.rel (%p316) target = $region59
        $region58: #{entity_linking_forward_pallas.1} parent=31 // pred_region
          %s319 = smul.u32 4, %s13
          %p320 = scmp.lt.s32.totalorder %s319, 7
          %s321 = scalar_select %p320, %s319, 7
          %s322 = scalar_lea.vmem %s2, %s321
          %s323 = smul.u32 4, %s13
        $region59: #{entity_linking_forward_pallas.1} parent=31 // pred_fallthru
          _
        // Predicated region
        $region60: #{entity_linking_forward_pallas.1} parent=31 // pred_check
          %p324 = pneg %p106
        $region61: #{entity_linking_forward_pallas.1} parent=31 // pred_check_branch
          %326 = sbr.rel (%p324) target = $region63
        $region62: #{entity_linking_forward_pallas.1} parent=31 // pred_region
          %s327 = smul.u32 64, %s13
          %p328 = scmp.lt.s32.totalorder %s327, 127
          %s329 = scalar_select %p328, %s327, 127
          %s330 = smul.addr %s329, 4
          %s331 = scalar_lea.vmem %s3, %s330
          %s332 = smul.u32 64, %s13
        $region63: #{entity_linking_forward_pallas.1} parent=31 // pred_fallthru
          _
      $region32: #{entity_linking_forward_pallas.1} parent=5 // pred_fallthru
        _
      %p333 = scmp.le.s32.totalorder 1, %s13
      %p334 = scmp.lt.s32.totalorder %s13, 3
      %p335 = pnand %p333, %p334
      %p336 = pneg %p335
      // Predicated region
      $region64: #{entity_linking_forward_pallas.1} parent=5 // pred_check
        _
      $region65: #{entity_linking_forward_pallas.1} parent=5 // pred_check_branch
        %338 = sbr.rel (%p335) target = $region67
      $region66: #{entity_linking_forward_pallas.1} parent=5 // pred_region
        %s339 = ssub.s32 %s13, 1
        %s340 = sand.u32 %s47, 1
        %s341 = sand.u32 %s47, 1
        %s342 = smul.addr %s341, 256
        %s343 = scalar_lea.vmem [#allocation5], %s342
        // Predicated region
        $region68: #{entity_linking_forward_pallas.1} parent=66 // pred_check
          %p344 = pneg %p60
        $region69: #{entity_linking_forward_pallas.1} parent=66 // pred_check_branch
          %346 = sbr.rel (%p344) target = $region71
        $region70: #{entity_linking_forward_pallas.1} parent=66 // pred_region
          _
        $region71: #{entity_linking_forward_pallas.1} parent=66 // pred_fallthru
          _
        %p347 = pneg %p34
        %p348 = pneg %p31
        %s349 = sand.u32 %s47, 1
        %s350 = sand.u32 %s47, 1
        %s351 = smul.addr %s350, 256
        %s352 = scalar_lea.vmem [#allocation5], %s351
        %p353 = pneg %p60
        %p354 = pneg %p57
        %s355 = smul.u32 4, %s18
        %p356 = scmp.lt.s32.totalorder %s355, 7
        %s357 = scalar_select %p356, %s355, 7
        %s358 = scalar_lea.vmem %s2, %s357
        %p359 = pneg %p86
        %p360 = pneg %p83
        %s361 = smul.u32 64, %s18
        %p362 = scmp.lt.s32.totalorder %s361, 127
        %s363 = scalar_select %p362, %s361, 127
        %s364 = smul.addr %s363, 4
        %s365 = scalar_lea.vmem %s3, %s364
        %p366 = pneg %p112
        %p367 = pneg %p109
        %p368 = pneg %p133
        %p369 = pneg %p130
        %p370 = pneg %p154
        %p371 = pneg %p151
        %p372 = pneg %p175
        %p373 = pneg %p172
        %p374 = pneg %p196
        %p375 = pneg %p193
        %s376 = smul.u32 4, %s18
        %s377 = smul.u32 4, %s18
        %p378 = scmp.lt.s32.totalorder %s377, 7
        %s379 = scalar_select %p378, %s377, 7
        %s380 = scalar_lea.vmem %s2, %s379
        %s381 = smul.u32 4, %s18
        %s382 = smul.u32 64, %s18
        %p383 = scmp.lt.s32.totalorder %s382, 127
        %s384 = scalar_select %p383, %s382, 127
        %s385 = smul.addr %s384, 4
        %s386 = scalar_lea.vmem %s3, %s385
        %s387 = smul.u32 64, %s18
        %v389 = vld [vmem:[%s0] sm:$0xf]
        %v390 = vld [vmem:[%s0 + $0x4] sm:$0xf]
        %v391 = vld [vmem:[%s0 + $0x8] sm:$0xf]
        %v392 = vld [vmem:[%s0 + $0xc] sm:$0xf]
        %v393 = vld [vmem:[%s0 + $0x10] sm:$0xf]
        %v394 = vld [vmem:[%s0 + $0x14] sm:$0xf]
        %v395 = vld [vmem:[%s0 + $0x18] sm:$0xf]
        %v396 = vld [vmem:[%s0 + $0x1c] sm:$0xf]
        %v397 = vld [vmem:[%s343] sm:$0xff]
        %v398 = vld [vmem:[%s343 + $0x8] sm:$0xff]
        %v399 = vld [vmem:[%s343 + $0x10] sm:$0xff]
        %v400 = vld [vmem:[%s343 + $0x18] sm:$0xff]
        %v401 = vld [vmem:[%s343 + $0x20] sm:$0xff]
        %v402 = vld [vmem:[%s343 + $0x28] sm:$0xff]
        %v403 = vld [vmem:[%s343 + $0x30] sm:$0xff]
        %v404 = vld [vmem:[%s343 + $0x38] sm:$0xff]
        %v405 = vld [vmem:[%s343 + $0x40] sm:$0xff]
        %v406 = vld [vmem:[%s343 + $0x48] sm:$0xff]
        %v407 = vld [vmem:[%s343 + $0x50] sm:$0xff]
        %v408 = vld [vmem:[%s343 + $0x58] sm:$0xff]
        %v409 = vld [vmem:[%s343 + $0x60] sm:$0xff]
        %v410 = vld [vmem:[%s343 + $0x68] sm:$0xff]
        %v411 = vld [vmem:[%s343 + $0x70] sm:$0xff]
        %v412 = vld [vmem:[%s343 + $0x78] sm:$0xff]
        %v413 = vld [vmem:[%s343 + $0x80] sm:$0xff]
        %v414 = vld [vmem:[%s343 + $0x88] sm:$0xff]
        %v415 = vld [vmem:[%s343 + $0x90] sm:$0xff]
        %v416 = vld [vmem:[%s343 + $0x98] sm:$0xff]
        %v417 = vld [vmem:[%s343 + $0xa0] sm:$0xff]
        %v418 = vld [vmem:[%s343 + $0xa8] sm:$0xff]
        %v419 = vld [vmem:[%s343 + $0xb0] sm:$0xff]
        %v420 = vld [vmem:[%s343 + $0xb8] sm:$0xff]
        %v421 = vld [vmem:[%s343 + $0xc0] sm:$0xff]
        %v422 = vld [vmem:[%s343 + $0xc8] sm:$0xff]
        %v423 = vld [vmem:[%s343 + $0xd0] sm:$0xff]
        %v424 = vld [vmem:[%s343 + $0xd8] sm:$0xff]
        %v425 = vld [vmem:[%s343 + $0xe0] sm:$0xff]
        %v426 = vld [vmem:[%s343 + $0xe8] sm:$0xff]
        %v427 = vld [vmem:[%s343 + $0xf0] sm:$0xff]
        %v428 = vld [vmem:[%s343 + $0xf8] sm:$0xff]
        %v429 = vld [vmem:[%s380] sm:$0xf]
        %v431 = vlaneseq
        %v432 = vshrl.u32 %v431, 7
        %v433 = vsub.s32 0, %v432
        %v434 = vrot.slane %v429, %v433
        %v435 = vlaneseq
        %v436 = vshrl.u32 %v435, 7
        %v437 = vsub.s32 1, %v436
        %v438 = vrot.slane %v429, %v437
        %v439 = vlaneseq
        %v440 = vshrl.u32 %v439, 7
        %v441 = vsub.s32 2, %v440
        %v442 = vrot.slane %v429, %v441
        %v443 = vlaneseq
        %v444 = vshrl.u32 %v443, 7
        %v445 = vsub.s32 3, %v444
        %v446 = vrot.slane %v429, %v445
        %v459 = vunpack.c.l.b16 %v389
        %v460 = vunpack.c.l.b16 %v390
        %v461 = vunpack.c.l.b16 %v391
        %v462 = vunpack.c.l.b16 %v392
        %v463 = vunpack.c.l.b16 %v393
        %v464 = vunpack.c.l.b16 %v394
        %v465 = vunpack.c.l.b16 %v395
        %v466 = vunpack.c.l.b16 %v396
        %v467 = vpack.c.b16 %v460, %v459
        %v468 = vpack.c.b16 %v462, %v461
        %v469 = vpack.c.b16 %v464, %v463
        %v470 = vpack.c.b16 %v466, %v465
        %v507 = vunpack.c.l.b16 %v397
        %v508 = vunpack.c.h.b16 %v397
        %v509 = vunpack.c.l.b16 %v398
        %v510 = vunpack.c.h.b16 %v398
        %v511 = vunpack.c.l.b16 %v399
        %v512 = vunpack.c.h.b16 %v399
        %v513 = vunpack.c.l.b16 %v400
        %v514 = vunpack.c.h.b16 %v400
        %v515 = vunpack.c.l.b16 %v401
        %v516 = vunpack.c.h.b16 %v401
        %v517 = vunpack.c.l.b16 %v402
        %v518 = vunpack.c.h.b16 %v402
        %v519 = vunpack.c.l.b16 %v403
        %v520 = vunpack.c.h.b16 %v403
        %v521 = vunpack.c.l.b16 %v404
        %v522 = vunpack.c.h.b16 %v404
        %v523 = vunpack.c.l.b16 %v405
        %v524 = vunpack.c.h.b16 %v405
        %v525 = vunpack.c.l.b16 %v406
        %v526 = vunpack.c.h.b16 %v406
        %v527 = vunpack.c.l.b16 %v407
        %v528 = vunpack.c.h.b16 %v407
        %v529 = vunpack.c.l.b16 %v408
        %v530 = vunpack.c.h.b16 %v408
        %v531 = vunpack.c.l.b16 %v409
        %v532 = vunpack.c.h.b16 %v409
        %v533 = vunpack.c.l.b16 %v410
        %v534 = vunpack.c.h.b16 %v410
        %v535 = vunpack.c.l.b16 %v411
        %v536 = vunpack.c.h.b16 %v411
        %v537 = vunpack.c.l.b16 %v412
        %v538 = vunpack.c.h.b16 %v412
        %v539 = vunpack.c.l.b16 %v413
        %v540 = vunpack.c.h.b16 %v413
        %v541 = vunpack.c.l.b16 %v414
        %v542 = vunpack.c.h.b16 %v414
        %v543 = vunpack.c.l.b16 %v415
        %v544 = vunpack.c.h.b16 %v415
        %v545 = vunpack.c.l.b16 %v416
        %v546 = vunpack.c.h.b16 %v416
        %v547 = vunpack.c.l.b16 %v417
        %v548 = vunpack.c.h.b16 %v417
        %v549 = vunpack.c.l.b16 %v418
        %v550 = vunpack.c.h.b16 %v418
        %v551 = vunpack.c.l.b16 %v419
        %v552 = vunpack.c.h.b16 %v419
        %v553 = vunpack.c.l.b16 %v420
        %v554 = vunpack.c.h.b16 %v420
        %v555 = vunpack.c.l.b16 %v421
        %v556 = vunpack.c.h.b16 %v421
        %v557 = vunpack.c.l.b16 %v422
        %v558 = vunpack.c.h.b16 %v422
        %v559 = vunpack.c.l.b16 %v423
        %v560 = vunpack.c.h.b16 %v423
        %v561 = vunpack.c.l.b16 %v424
        %v562 = vunpack.c.h.b16 %v424
        %v563 = vunpack.c.l.b16 %v425
        %v564 = vunpack.c.h.b16 %v425
        %v565 = vunpack.c.l.b16 %v426
        %v566 = vunpack.c.h.b16 %v426
        %v567 = vunpack.c.l.b16 %v427
        %v568 = vunpack.c.h.b16 %v427
        %v569 = vunpack.c.l.b16 %v428
        %v570 = vunpack.c.h.b16 %v428
        %v571 = vpack.c.b16 %v511, %v507
        %v572 = vpack.c.b16 %v512, %v508
        %v573 = vpack.c.b16 %v513, %v509
        %v574 = vpack.c.b16 %v514, %v510
        %v575 = vpack.c.b16 %v519, %v515
        %v576 = vpack.c.b16 %v520, %v516
        %v577 = vpack.c.b16 %v521, %v517
        %v578 = vpack.c.b16 %v522, %v518
        %v579 = vpack.c.b16 %v527, %v523
        %v580 = vpack.c.b16 %v528, %v524
        %v581 = vpack.c.b16 %v529, %v525
        %v582 = vpack.c.b16 %v530, %v526
        %v583 = vpack.c.b16 %v535, %v531
        %v584 = vpack.c.b16 %v536, %v532
        %v585 = vpack.c.b16 %v537, %v533
        %v586 = vpack.c.b16 %v538, %v534
        %v587 = vpack.c.b16 %v543, %v539
        %v588 = vpack.c.b16 %v544, %v540
        %v589 = vpack.c.b16 %v545, %v541
        %v590 = vpack.c.b16 %v546, %v542
        %v591 = vpack.c.b16 %v551, %v547
        %v592 = vpack.c.b16 %v552, %v548
        %v593 = vpack.c.b16 %v553, %v549
        %v594 = vpack.c.b16 %v554, %v550
        %v595 = vpack.c.b16 %v559, %v555
        %v596 = vpack.c.b16 %v560, %v556
        %v597 = vpack.c.b16 %v561, %v557
        %v598 = vpack.c.b16 %v562, %v558
        %v599 = vpack.c.b16 %v567, %v563
        %v600 = vpack.c.b16 %v568, %v564
        %v601 = vpack.c.b16 %v569, %v565
        %v602 = vpack.c.b16 %v570, %v566
        %635 = vmatprep.subr.bf16.mxu0 %v572
        %636 = vmatpush1.bf16.msra.mxu0 %v571
        %637 = vmatprep.subr.bf16.mxu0 %v576
        %638 = vmatpush1.bf16.msra.mxu0 %v575
        %639 = vmatprep.subr.bf16.mxu0 %v580
        %640 = vmatpush1.bf16.msra.mxu0 %v579
        %641 = vmatprep.subr.bf16.mxu0 %v584
        %642 = vmatpush1.bf16.msra.mxu0 %v583
        %643 = vmatprep.subr.bf16.mxu0 %v588
        %644 = vmatpush1.bf16.msra.mxu0 %v587
        %645 = vmatprep.subr.bf16.mxu0 %v592
        %646 = vmatpush1.bf16.msra.mxu0 %v591
        %647 = vmatprep.subr.bf16.mxu0 %v596
        %648 = vmatpush1.bf16.msra.mxu0 %v595
        %649 = vmatprep.subr.bf16.mxu0 %v600
        %650 = vmatpush1.bf16.msra.mxu0 %v599
        %651 = vmatprep.subr.bf16.mxu0 0
        %652 = vmatpush1.bf16.msra.mxu0 0
        %653 = vmatprep.subr.bf16.mxu0 0
        %654 = vmatpush1.bf16.msra.mxu0 0
        %655 = vmatprep.subr.bf16.mxu0 0
        %656 = vmatpush1.bf16.msra.mxu0 0
        %657 = vmatprep.subr.bf16.mxu0 0
        %658 = vmatpush1.bf16.msra.mxu0 0
        %659 = vmatprep.subr.bf16.mxu0 0
        %660 = vmatpush1.bf16.msra.mxu0 0
        %661 = vmatprep.subr.bf16.mxu0 0
        %662 = vmatpush1.bf16.msra.mxu0 0
        %663 = vmatprep.subr.bf16.mxu0 0
        %664 = vmatpush1.bf16.msra.mxu0 0
        %665 = vmatprep.subr.bf16.mxu0 0
        %666 = vmatpush1.bf16.msra.mxu0 0
        %667 = vmatprep.mubr.bf16.mxu0 0
        %668 = vmatmul.mubr.bf16.gmra.mrb[0].mxu0 %v467
        %v669 = vpop.f32.mrb[0].mxu0
        %v670 = vadd.f32 %v434, %v669
        %v671 = vpop.f32.mrb[0].mxu0
        %v672 = vadd.f32 %v438, %v671
        %v673 = vpop.f32.mrb[0].mxu0
        %v674 = vadd.f32 %v434, %v673
        %v675 = vpop.f32.mrb[0].mxu0
        %v676 = vadd.f32 %v438, %v675
        %677 = vmatprep.mubr.bf16.mxu0 0
        %678 = vmatmul.mubr.bf16.gmra.mrb[0].mxu0 %v468
        %v679 = vpop.f32.mrb[0].mxu0
        %v680 = vadd.f32 %v434, %v679
        %v681 = vpop.f32.mrb[0].mxu0
        %v682 = vadd.f32 %v438, %v681
        %v683 = vpop.f32.mrb[0].mxu0
        %v684 = vadd.f32 %v434, %v683
        %v685 = vpop.f32.mrb[0].mxu0
        %v686 = vadd.f32 %v438, %v685
        %687 = vmatprep.mubr.bf16.mxu0 0
        %688 = vmatmul.mubr.bf16.gmra.mrb[0].mxu0 %v469
        %v689 = vpop.f32.mrb[0].mxu0
        %v690 = vadd.f32 %v434, %v689
        %v691 = vpop.f32.mrb[0].mxu0
        %v692 = vadd.f32 %v438, %v691
        %v693 = vpop.f32.mrb[0].mxu0
        %v694 = vadd.f32 %v434, %v693
        %v695 = vpop.f32.mrb[0].mxu0
        %v696 = vadd.f32 %v438, %v695
        %697 = vmatprep.mubr.bf16.mxu0 0
        %698 = vmatmul.mubr.bf16.gmra.mrb[0].mxu0 %v470
        %v699 = vpop.f32.mrb[0].mxu0
        %v700 = vadd.f32 %v434, %v699
        %v701 = vpop.f32.mrb[0].mxu0
        %v702 = vadd.f32 %v438, %v701
        %v703 = vpop.f32.mrb[0].mxu0
        %v704 = vadd.f32 %v434, %v703
        %v705 = vpop.f32.mrb[0].mxu0
        %v706 = vadd.f32 %v438, %v705
        %707 = vdwg.mxu0
        %708 = vmatprep.subr.bf16.mxu0 %v574
        %709 = vmatpush1.bf16.msra.mxu0 %v573
        %710 = vmatprep.subr.bf16.mxu0 %v578
        %711 = vmatpush1.bf16.msra.mxu0 %v577
        %712 = vmatprep.subr.bf16.mxu0 %v582
        %713 = vmatpush1.bf16.msra.mxu0 %v581
        %714 = vmatprep.subr.bf16.mxu0 %v586
        %715 = vmatpush1.bf16.msra.mxu0 %v585
        %716 = vmatprep.subr.bf16.mxu0 %v590
        %717 = vmatpush1.bf16.msra.mxu0 %v589
        %718 = vmatprep.subr.bf16.mxu0 %v594
        %719 = vmatpush1.bf16.msra.mxu0 %v593
        %720 = vmatprep.subr.bf16.mxu0 %v598
        %721 = vmatpush1.bf16.msra.mxu0 %v597
        %722 = vmatprep.subr.bf16.mxu0 %v602
        %723 = vmatpush1.bf16.msra.mxu0 %v601
        %724 = vmatprep.subr.bf16.mxu0 0
        %725 = vmatpush1.bf16.msra.mxu0 0
        %726 = vmatprep.subr.bf16.mxu0 0
        %727 = vmatpush1.bf16.msra.mxu0 0
        %728 = vmatprep.subr.bf16.mxu0 0
        %729 = vmatpush1.bf16.msra.mxu0 0
        %730 = vmatprep.subr.bf16.mxu0 0
        %731 = vmatpush1.bf16.msra.mxu0 0
        %732 = vmatprep.subr.bf16.mxu0 0
        %733 = vmatpush1.bf16.msra.mxu0 0
        %734 = vmatprep.subr.bf16.mxu0 0
        %735 = vmatpush1.bf16.msra.mxu0 0
        %736 = vmatprep.subr.bf16.mxu0 0
        %737 = vmatpush1.bf16.msra.mxu0 0
        %738 = vmatprep.subr.bf16.mxu0 0
        %739 = vmatpush1.bf16.msra.mxu0 0
        %740 = vmatprep.mubr.bf16.mxu0 0
        %741 = vmatmul.mubr.bf16.gmra.mrb[0].mxu0 %v467
        %v742 = vpop.f32.mrb[0].mxu0
        %v743 = vadd.f32 %v442, %v742
        %v744 = vpop.f32.mrb[0].mxu0
        %v745 = vadd.f32 %v446, %v744
        %v746 = vpop.f32.mrb[0].mxu0
        %v747 = vadd.f32 %v442, %v746
        %v748 = vpop.f32.mrb[0].mxu0
        %v749 = vadd.f32 %v446, %v748
        %750 = vmatprep.mubr.bf16.mxu0 0
        %751 = vmatmul.mubr.bf16.gmra.mrb[0].mxu0 %v468
        %v752 = vpop.f32.mrb[0].mxu0
        %v753 = vadd.f32 %v442, %v752
        %v754 = vpop.f32.mrb[0].mxu0
        %v755 = vadd.f32 %v446, %v754
        %v756 = vpop.f32.mrb[0].mxu0
        %v757 = vadd.f32 %v442, %v756
        %v758 = vpop.f32.mrb[0].mxu0
        %v759 = vadd.f32 %v446, %v758
        %760 = vmatprep.mubr.bf16.mxu0 0
        %761 = vmatmul.mubr.bf16.gmra.mrb[0].mxu0 %v469
        %v762 = vpop.f32.mrb[0].mxu0
        %v763 = vadd.f32 %v442, %v762
        %v764 = vpop.f32.mrb[0].mxu0
        %v765 = vadd.f32 %v446, %v764
        %v766 = vpop.f32.mrb[0].mxu0
        %v767 = vadd.f32 %v442, %v766
        %v768 = vpop.f32.mrb[0].mxu0
        %v769 = vadd.f32 %v446, %v768
        %770 = vmatprep.mubr.bf16.mxu0 0
        %771 = vmatmul.mubr.bf16.gmra.mrb[0].mxu0 %v470
        %v772 = vpop.f32.mrb[0].mxu0
        %v773 = vadd.f32 %v442, %v772
        %v774 = vpop.f32.mrb[0].mxu0
        %v775 = vadd.f32 %v446, %v774
        %v776 = vpop.f32.mrb[0].mxu0
        %v777 = vadd.f32 %v442, %v776
        %v778 = vpop.f32.mrb[0].mxu0
        %v779 = vadd.f32 %v446, %v778
        %780 = vdwg.mxu0
        %vm781 = vcmp.gt.f32.partialorder %v670, 0.0
        %vm782 = vcmp.gt.f32.partialorder %v672, 0.0
        %vm783 = vcmp.gt.f32.partialorder %v743, 0.0
        %vm784 = vcmp.gt.f32.partialorder %v745, 0.0
        %vm785 = vcmp.gt.f32.partialorder %v674, 0.0
        %vm786 = vcmp.gt.f32.partialorder %v676, 0.0
        %vm787 = vcmp.gt.f32.partialorder %v747, 0.0
        %vm788 = vcmp.gt.f32.partialorder %v749, 0.0
        %vm789 = vcmp.gt.f32.partialorder %v680, 0.0
        %vm790 = vcmp.gt.f32.partialorder %v682, 0.0
        %vm791 = vcmp.gt.f32.partialorder %v753, 0.0
        %vm792 = vcmp.gt.f32.partialorder %v755, 0.0
        %vm793 = vcmp.gt.f32.partialorder %v684, 0.0
        %vm794 = vcmp.gt.f32.partialorder %v686, 0.0
        %vm795 = vcmp.gt.f32.partialorder %v757, 0.0
        %vm796 = vcmp.gt.f32.partialorder %v759, 0.0
        %vm797 = vcmp.gt.f32.partialorder %v690, 0.0
        %vm798 = vcmp.gt.f32.partialorder %v692, 0.0
        %vm799 = vcmp.gt.f32.partialorder %v763, 0.0
        %vm800 = vcmp.gt.f32.partialorder %v765, 0.0
        %vm801 = vcmp.gt.f32.partialorder %v694, 0.0
        %vm802 = vcmp.gt.f32.partialorder %v696, 0.0
        %vm803 = vcmp.gt.f32.partialorder %v767, 0.0
        %vm804 = vcmp.gt.f32.partialorder %v769, 0.0
        %vm805 = vcmp.gt.f32.partialorder %v700, 0.0
        %vm806 = vcmp.gt.f32.partialorder %v702, 0.0
        %vm807 = vcmp.gt.f32.partialorder %v773, 0.0
        %vm808 = vcmp.gt.f32.partialorder %v775, 0.0
        %vm809 = vcmp.gt.f32.partialorder %v704, 0.0
        %vm810 = vcmp.gt.f32.partialorder %v706, 0.0
        %vm811 = vcmp.gt.f32.partialorder %v777, 0.0
        %vm812 = vcmp.gt.f32.partialorder %v779, 0.0
        %v813 = vmul.f32 %v670, 0.1
        %v814 = vmul.f32 %v672, 0.1
        %v815 = vmul.f32 %v743, 0.1
        %v816 = vmul.f32 %v745, 0.1
        %v817 = vmul.f32 %v674, 0.1
        %v818 = vmul.f32 %v676, 0.1
        %v819 = vmul.f32 %v747, 0.1
        %v820 = vmul.f32 %v749, 0.1
        %v821 = vmul.f32 %v680, 0.1
        %v822 = vmul.f32 %v682, 0.1
        %v823 = vmul.f32 %v753, 0.1
        %v824 = vmul.f32 %v755, 0.1
        %v825 = vmul.f32 %v684, 0.1
        %v826 = vmul.f32 %v686, 0.1
        %v827 = vmul.f32 %v757, 0.1
        %v828 = vmul.f32 %v759, 0.1
        %v829 = vmul.f32 %v690, 0.1
        %v830 = vmul.f32 %v692, 0.1
        %v831 = vmul.f32 %v763, 0.1
        %v832 = vmul.f32 %v765, 0.1
        %v833 = vmul.f32 %v694, 0.1
        %v834 = vmul.f32 %v696, 0.1
        %v835 = vmul.f32 %v767, 0.1
        %v836 = vmul.f32 %v769, 0.1
        %v837 = vmul.f32 %v700, 0.1
        %v838 = vmul.f32 %v702, 0.1
        %v839 = vmul.f32 %v773, 0.1
        %v840 = vmul.f32 %v775, 0.1
        %v841 = vmul.f32 %v704, 0.1
        %v842 = vmul.f32 %v706, 0.1
        %v843 = vmul.f32 %v777, 0.1
        %v844 = vmul.f32 %v779, 0.1
        %v845 = vsel %vm781, %v670, %v813
        %v846 = vsel %vm782, %v672, %v814
        %v847 = vsel %vm783, %v743, %v815
        %v848 = vsel %vm784, %v745, %v816
        %v849 = vsel %vm785, %v674, %v817
        %v850 = vsel %vm786, %v676, %v818
        %v851 = vsel %vm787, %v747, %v819
        %v852 = vsel %vm788, %v749, %v820
        %v853 = vsel %vm789, %v680, %v821
        %v854 = vsel %vm790, %v682, %v822
        %v855 = vsel %vm791, %v753, %v823
        %v856 = vsel %vm792, %v755, %v824
        %v857 = vsel %vm793, %v684, %v825
        %v858 = vsel %vm794, %v686, %v826
        %v859 = vsel %vm795, %v757, %v827
        %v860 = vsel %vm796, %v759, %v828
        %v861 = vsel %vm797, %v690, %v829
        %v862 = vsel %vm798, %v692, %v830
        %v863 = vsel %vm799, %v763, %v831
        %v864 = vsel %vm800, %v765, %v832
        %v865 = vsel %vm801, %v694, %v833
        %v866 = vsel %vm802, %v696, %v834
        %v867 = vsel %vm803, %v767, %v835
        %v868 = vsel %vm804, %v769, %v836
        %v869 = vsel %vm805, %v700, %v837
        %v870 = vsel %vm806, %v702, %v838
        %v871 = vsel %vm807, %v773, %v839
        %v872 = vsel %vm808, %v775, %v840
        %v873 = vsel %vm809, %v704, %v841
        %v874 = vsel %vm810, %v706, %v842
        %v875 = vsel %vm811, %v777, %v843
        %v876 = vsel %vm812, %v779, %v844
        %v877 = vpack.c.bf16 %v849, %v845
        %v878 = vpack.c.bf16 %v850, %v846
        %v879 = vpack.c.bf16 %v851, %v847
        %v880 = vpack.c.bf16 %v852, %v848
        %v881 = vpack.c.bf16 %v857, %v853
        %v882 = vpack.c.bf16 %v858, %v854
        %v883 = vpack.c.bf16 %v859, %v855
        %v884 = vpack.c.bf16 %v860, %v856
        %v885 = vpack.c.bf16 %v865, %v861
        %v886 = vpack.c.bf16 %v866, %v862
        %v887 = vpack.c.bf16 %v867, %v863
        %v888 = vpack.c.bf16 %v868, %v864
        %v889 = vpack.c.bf16 %v873, %v869
        %v890 = vpack.c.bf16 %v874, %v870
        %v891 = vpack.c.bf16 %v875, %v871
        %v892 = vpack.c.bf16 %v876, %v872
        %v893 = vld [vmem:[%s386] sm:$0xf]
        %v894 = vld [vmem:[%s386 + $0x4] sm:$0xf]
        %v895 = vld [vmem:[%s386 + $0x8] sm:$0xf]
        %v896 = vld [vmem:[%s386 + $0xc] sm:$0xf]
        %v897 = vld [vmem:[%s386 + $0x10] sm:$0xf]
        %v898 = vld [vmem:[%s386 + $0x14] sm:$0xf]
        %v899 = vld [vmem:[%s386 + $0x18] sm:$0xf]
        %v900 = vld [vmem:[%s386 + $0x1c] sm:$0xf]
        %v901 = vld [vmem:[%s386 + $0x20] sm:$0xf]
        %v902 = vld [vmem:[%s386 + $0x24] sm:$0xf]
        %v903 = vld [vmem:[%s386 + $0x28] sm:$0xf]
        %v904 = vld [vmem:[%s386 + $0x2c] sm:$0xf]
        %v905 = vld [vmem:[%s386 + $0x30] sm:$0xf]
        %v906 = vld [vmem:[%s386 + $0x34] sm:$0xf]
        %v907 = vld [vmem:[%s386 + $0x38] sm:$0xf]
        %v908 = vld [vmem:[%s386 + $0x3c] sm:$0xf]
        %v909 = vld [vmem:[%s386 + $0x40] sm:$0xf]
        %v910 = vld [vmem:[%s386 + $0x44] sm:$0xf]
        %v911 = vld [vmem:[%s386 + $0x48] sm:$0xf]
        %v912 = vld [vmem:[%s386 + $0x4c] sm:$0xf]
        %v913 = vld [vmem:[%s386 + $0x50] sm:$0xf]
        %v914 = vld [vmem:[%s386 + $0x54] sm:$0xf]
        %v915 = vld [vmem:[%s386 + $0x58] sm:$0xf]
        %v916 = vld [vmem:[%s386 + $0x5c] sm:$0xf]
        %v917 = vld [vmem:[%s386 + $0x60] sm:$0xf]
        %v918 = vld [vmem:[%s386 + $0x64] sm:$0xf]
        %v919 = vld [vmem:[%s386 + $0x68] sm:$0xf]
        %v920 = vld [vmem:[%s386 + $0x6c] sm:$0xf]
        %v921 = vld [vmem:[%s386 + $0x70] sm:$0xf]
        %v922 = vld [vmem:[%s386 + $0x74] sm:$0xf]
        %v923 = vld [vmem:[%s386 + $0x78] sm:$0xf]
        %v924 = vld [vmem:[%s386 + $0x7c] sm:$0xf]
        %v925 = vld [vmem:[%s386 + $0x80] sm:$0xf]
        %v926 = vld [vmem:[%s386 + $0x84] sm:$0xf]
        %v927 = vld [vmem:[%s386 + $0x88] sm:$0xf]
        %v928 = vld [vmem:[%s386 + $0x8c] sm:$0xf]
        %v929 = vld [vmem:[%s386 + $0x90] sm:$0xf]
        %v930 = vld [vmem:[%s386 + $0x94] sm:$0xf]
        %v931 = vld [vmem:[%s386 + $0x98] sm:$0xf]
        %v932 = vld [vmem:[%s386 + $0x9c] sm:$0xf]
        %v933 = vld [vmem:[%s386 + $0xa0] sm:$0xf]
        %v934 = vld [vmem:[%s386 + $0xa4] sm:$0xf]
        %v935 = vld [vmem:[%s386 + $0xa8] sm:$0xf]
        %v936 = vld [vmem:[%s386 + $0xac] sm:$0xf]
        %v937 = vld [vmem:[%s386 + $0xb0] sm:$0xf]
        %v938 = vld [vmem:[%s386 + $0xb4] sm:$0xf]
        %v939 = vld [vmem:[%s386 + $0xb8] sm:$0xf]
        %v940 = vld [vmem:[%s386 + $0xbc] sm:$0xf]
        %v941 = vld [vmem:[%s386 + $0xc0] sm:$0xf]
        %v942 = vld [vmem:[%s386 + $0xc4] sm:$0xf]
        %v943 = vld [vmem:[%s386 + $0xc8] sm:$0xf]
        %v944 = vld [vmem:[%s386 + $0xcc] sm:$0xf]
        %v945 = vld [vmem:[%s386 + $0xd0] sm:$0xf]
        %v946 = vld [vmem:[%s386 + $0xd4] sm:$0xf]
        %v947 = vld [vmem:[%s386 + $0xd8] sm:$0xf]
        %v948 = vld [vmem:[%s386 + $0xdc] sm:$0xf]
        %v949 = vld [vmem:[%s386 + $0xe0] sm:$0xf]
        %v950 = vld [vmem:[%s386 + $0xe4] sm:$0xf]
        %v951 = vld [vmem:[%s386 + $0xe8] sm:$0xf]
        %v952 = vld [vmem:[%s386 + $0xec] sm:$0xf]
        %v953 = vld [vmem:[%s386 + $0xf0] sm:$0xf]
        %v954 = vld [vmem:[%s386 + $0xf4] sm:$0xf]
        %v955 = vld [vmem:[%s386 + $0xf8] sm:$0xf]
        %v956 = vld [vmem:[%s386 + $0xfc] sm:$0xf]
        %v1021 = vunpack.c.l.b16 %v893
        %v1022 = vunpack.c.l.b16 %v894
        %v1023 = vunpack.c.l.b16 %v895
        %v1024 = vunpack.c.l.b16 %v896
        %v1025 = vunpack.c.l.b16 %v897
        %v1026 = vunpack.c.l.b16 %v898
        %v1027 = vunpack.c.l.b16 %v899
        %v1028 = vunpack.c.l.b16 %v900
        %v1029 = vunpack.c.l.b16 %v901
        %v1030 = vunpack.c.l.b16 %v902
        %v1031 = vunpack.c.l.b16 %v903
        %v1032 = vunpack.c.l.b16 %v904
        %v1033 = vunpack.c.l.b16 %v905
        %v1034 = vunpack.c.l.b16 %v906
        %v1035 = vunpack.c.l.b16 %v907
        %v1036 = vunpack.c.l.b16 %v908
        %v1037 = vunpack.c.l.b16 %v909
        %v1038 = vunpack.c.l.b16 %v910
        %v1039 = vunpack.c.l.b16 %v911
        %v1040 = vunpack.c.l.b16 %v912
        %v1041 = vunpack.c.l.b16 %v913
        %v1042 = vunpack.c.l.b16 %v914
        %v1043 = vunpack.c.l.b16 %v915
        %v1044 = vunpack.c.l.b16 %v916
        %v1045 = vunpack.c.l.b16 %v917
        %v1046 = vunpack.c.l.b16 %v918
        %v1047 = vunpack.c.l.b16 %v919
        %v1048 = vunpack.c.l.b16 %v920
        %v1049 = vunpack.c.l.b16 %v921
        %v1050 = vunpack.c.l.b16 %v922
        %v1051 = vunpack.c.l.b16 %v923
        %v1052 = vunpack.c.l.b16 %v924
        %v1053 = vunpack.c.l.b16 %v925
        %v1054 = vunpack.c.l.b16 %v926
        %v1055 = vunpack.c.l.b16 %v927
        %v1056 = vunpack.c.l.b16 %v928
        %v1057 = vunpack.c.l.b16 %v929
        %v1058 = vunpack.c.l.b16 %v930
        %v1059 = vunpack.c.l.b16 %v931
        %v1060 = vunpack.c.l.b16 %v932
        %v1061 = vunpack.c.l.b16 %v933
        %v1062 = vunpack.c.l.b16 %v934
        %v1063 = vunpack.c.l.b16 %v935
        %v1064 = vunpack.c.l.b16 %v936
        %v1065 = vunpack.c.l.b16 %v937
        %v1066 = vunpack.c.l.b16 %v938
        %v1067 = vunpack.c.l.b16 %v939
        %v1068 = vunpack.c.l.b16 %v940
        %v1069 = vunpack.c.l.b16 %v941
        %v1070 = vunpack.c.l.b16 %v942
        %v1071 = vunpack.c.l.b16 %v943
        %v1072 = vunpack.c.l.b16 %v944
        %v1073 = vunpack.c.l.b16 %v945
        %v1074 = vunpack.c.l.b16 %v946
        %v1075 = vunpack.c.l.b16 %v947
        %v1076 = vunpack.c.l.b16 %v948
        %v1077 = vunpack.c.l.b16 %v949
        %v1078 = vunpack.c.l.b16 %v950
        %v1079 = vunpack.c.l.b16 %v951
        %v1080 = vunpack.c.l.b16 %v952
        %v1081 = vunpack.c.l.b16 %v953
        %v1082 = vunpack.c.l.b16 %v954
        %v1083 = vunpack.c.l.b16 %v955
        %v1084 = vunpack.c.l.b16 %v956
        %v1085 = vpack.c.b16 %v1022, %v1021
        %v1086 = vpack.c.b16 %v1024, %v1023
        %v1087 = vpack.c.b16 %v1026, %v1025
        %v1088 = vpack.c.b16 %v1028, %v1027
        %v1089 = vpack.c.b16 %v1030, %v1029
        %v1090 = vpack.c.b16 %v1032, %v1031
        %v1091 = vpack.c.b16 %v1034, %v1033
        %v1092 = vpack.c.b16 %v1036, %v1035
        %v1093 = vpack.c.b16 %v1038, %v1037
        %v1094 = vpack.c.b16 %v1040, %v1039
        %v1095 = vpack.c.b16 %v1042, %v1041
        %v1096 = vpack.c.b16 %v1044, %v1043
        %v1097 = vpack.c.b16 %v1046, %v1045
        %v1098 = vpack.c.b16 %v1048, %v1047
        %v1099 = vpack.c.b16 %v1050, %v1049
        %v1100 = vpack.c.b16 %v1052, %v1051
        %v1101 = vpack.c.b16 %v1054, %v1053
        %v1102 = vpack.c.b16 %v1056, %v1055
        %v1103 = vpack.c.b16 %v1058, %v1057
        %v1104 = vpack.c.b16 %v1060, %v1059
        %v1105 = vpack.c.b16 %v1062, %v1061
        %v1106 = vpack.c.b16 %v1064, %v1063
        %v1107 = vpack.c.b16 %v1066, %v1065
        %v1108 = vpack.c.b16 %v1068, %v1067
        %v1109 = vpack.c.b16 %v1070, %v1069
        %v1110 = vpack.c.b16 %v1072, %v1071
        %v1111 = vpack.c.b16 %v1074, %v1073
        %v1112 = vpack.c.b16 %v1076, %v1075
        %v1113 = vpack.c.b16 %v1078, %v1077
        %v1114 = vpack.c.b16 %v1080, %v1079
        %v1115 = vpack.c.b16 %v1082, %v1081
        %v1116 = vpack.c.b16 %v1084, %v1083
        %1149 = vmatprep.subr.bf16.mxu0 0
        %1150 = vmatpush1.bf16.msra.mxu0 %v1085
        %1151 = vmatprep.subr.bf16.mxu0 0
        %1152 = vmatpush1.bf16.msra.mxu0 %v1086
        %1153 = vmatprep.subr.bf16.mxu0 0
        %1154 = vmatpush1.bf16.msra.mxu0 %v1087
        %1155 = vmatprep.subr.bf16.mxu0 0
        %1156 = vmatpush1.bf16.msra.mxu0 %v1088
        %1157 = vmatprep.subr.bf16.mxu0 0
        %1158 = vmatpush1.bf16.msra.mxu0 %v1089
        %1159 = vmatprep.subr.bf16.mxu0 0
        %1160 = vmatpush1.bf16.msra.mxu0 %v1090
        %1161 = vmatprep.subr.bf16.mxu0 0
        %1162 = vmatpush1.bf16.msra.mxu0 %v1091
        %1163 = vmatprep.subr.bf16.mxu0 0
        %1164 = vmatpush1.bf16.msra.mxu0 %v1092
        %1165 = vmatprep.subr.bf16.mxu0 0
        %1166 = vmatpush1.bf16.msra.mxu0 %v1093
        %1167 = vmatprep.subr.bf16.mxu0 0
        %1168 = vmatpush1.bf16.msra.mxu0 %v1094
        %1169 = vmatprep.subr.bf16.mxu0 0
        %1170 = vmatpush1.bf16.msra.mxu0 %v1095
        %1171 = vmatprep.subr.bf16.mxu0 0
        %1172 = vmatpush1.bf16.msra.mxu0 %v1096
        %1173 = vmatprep.subr.bf16.mxu0 0
        %1174 = vmatpush1.bf16.msra.mxu0 %v1097
        %1175 = vmatprep.subr.bf16.mxu0 0
        %1176 = vmatpush1.bf16.msra.mxu0 %v1098
        %1177 = vmatprep.subr.bf16.mxu0 0
        %1178 = vmatpush1.bf16.msra.mxu0 %v1099
        %1179 = vmatprep.subr.bf16.mxu0 0
        %1180 = vmatpush1.bf16.msra.mxu0 %v1100
        %1181 = vmatprep.mubr.bf16.mxu0 %v878
        %1182 = vmatmul.mubr.bf16.gmra.mrb[0].mxu0 %v877
        %v1183 = vpop.f32.mrb[0].mxu0
        %v1184 = vadd.f32 0.0, %v1183
        %v1185 = vpop.f32.mrb[0].mxu0
        %v1186 = vpop.f32.mrb[0].mxu0
        %v1187 = vadd.f32 0.0, %v1186
        %v1188 = vpop.f32.mrb[0].mxu0
        %1189 = vmatprep.mubr.bf16.mxu0 %v882
        %1190 = vmatmul.mubr.bf16.gmra.mrb[0].mxu0 %v881
        %v1191 = vpop.f32.mrb[0].mxu0
        %v1192 = vadd.f32 0.0, %v1191
        %v1193 = vpop.f32.mrb[0].mxu0
        %v1194 = vpop.f32.mrb[0].mxu0
        %v1195 = vadd.f32 0.0, %v1194
        %v1196 = vpop.f32.mrb[0].mxu0
        %1197 = vmatprep.mubr.bf16.mxu0 %v886
        %1198 = vmatmul.mubr.bf16.gmra.mrb[0].mxu0 %v885
        %v1199 = vpop.f32.mrb[0].mxu0
        %v1200 = vadd.f32 0.0, %v1199
        %v1201 = vpop.f32.mrb[0].mxu0
        %v1202 = vpop.f32.mrb[0].mxu0
        %v1203 = vadd.f32 0.0, %v1202
        %v1204 = vpop.f32.mrb[0].mxu0
        %1205 = vmatprep.mubr.bf16.mxu0 %v890
        %1206 = vmatmul.mubr.bf16.gmra.mrb[0].mxu0 %v889
        %v1207 = vpop.f32.mrb[0].mxu0
        %v1208 = vadd.f32 0.0, %v1207
        %v1209 = vpop.f32.mrb[0].mxu0
        %v1210 = vpop.f32.mrb[0].mxu0
        %v1211 = vadd.f32 0.0, %v1210
        %v1212 = vpop.f32.mrb[0].mxu0
        %1213 = vdwg.mxu0
        %1214 = vmatprep.subr.bf16.mxu0 0
        %1215 = vmatpush1.bf16.msra.mxu0 %v1101
        %1216 = vmatprep.subr.bf16.mxu0 0
        %1217 = vmatpush1.bf16.msra.mxu0 %v1102
        %1218 = vmatprep.subr.bf16.mxu0 0
        %1219 = vmatpush1.bf16.msra.mxu0 %v1103
        %1220 = vmatprep.subr.bf16.mxu0 0
        %1221 = vmatpush1.bf16.msra.mxu0 %v1104
        %1222 = vmatprep.subr.bf16.mxu0 0
        %1223 = vmatpush1.bf16.msra.mxu0 %v1105
        %1224 = vmatprep.subr.bf16.mxu0 0
        %1225 = vmatpush1.bf16.msra.mxu0 %v1106
        %1226 = vmatprep.subr.bf16.mxu0 0
        %1227 = vmatpush1.bf16.msra.mxu0 %v1107
        %1228 = vmatprep.subr.bf16.mxu0 0
        %1229 = vmatpush1.bf16.msra.mxu0 %v1108
        %1230 = vmatprep.subr.bf16.mxu0 0
        %1231 = vmatpush1.bf16.msra.mxu0 %v1109
        %1232 = vmatprep.subr.bf16.mxu0 0
        %1233 = vmatpush1.bf16.msra.mxu0 %v1110
        %1234 = vmatprep.subr.bf16.mxu0 0
        %1235 = vmatpush1.bf16.msra.mxu0 %v1111
        %1236 = vmatprep.subr.bf16.mxu0 0
        %1237 = vmatpush1.bf16.msra.mxu0 %v1112
        %1238 = vmatprep.subr.bf16.mxu0 0
        %1239 = vmatpush1.bf16.msra.mxu0 %v1113
        %1240 = vmatprep.subr.bf16.mxu0 0
        %1241 = vmatpush1.bf16.msra.mxu0 %v1114
        %1242 = vmatprep.subr.bf16.mxu0 0
        %1243 = vmatpush1.bf16.msra.mxu0 %v1115
        %1244 = vmatprep.subr.bf16.mxu0 0
        %1245 = vmatpush1.bf16.msra.mxu0 %v1116
        %1246 = vmatprep.mubr.bf16.mxu0 %v880
        %1247 = vmatmul.mubr.bf16.gmra.mrb[0].mxu0 %v879
        %v1248 = vpop.f32.mrb[0].mxu0
        %v1249 = vadd.f32 %v1184, %v1248
        %v1250 = vpop.f32.mrb[0].mxu0
        %v1251 = vpop.f32.mrb[0].mxu0
        %v1252 = vadd.f32 %v1187, %v1251
        %v1253 = vpop.f32.mrb[0].mxu0
        %1254 = vmatprep.mubr.bf16.mxu0 %v884
        %1255 = vmatmul.mubr.bf16.gmra.mrb[0].mxu0 %v883
        %v1256 = vpop.f32.mrb[0].mxu0
        %v1257 = vadd.f32 %v1192, %v1256
        %v1258 = vpop.f32.mrb[0].mxu0
        %v1259 = vpop.f32.mrb[0].mxu0
        %v1260 = vadd.f32 %v1195, %v1259
        %v1261 = vpop.f32.mrb[0].mxu0
        %1262 = vmatprep.mubr.bf16.mxu0 %v888
        %1263 = vmatmul.mubr.bf16.gmra.mrb[0].mxu0 %v887
        %v1264 = vpop.f32.mrb[0].mxu0
        %v1265 = vadd.f32 %v1200, %v1264
        %v1266 = vpop.f32.mrb[0].mxu0
        %v1267 = vpop.f32.mrb[0].mxu0
        %v1268 = vadd.f32 %v1203, %v1267
        %v1269 = vpop.f32.mrb[0].mxu0
        %1270 = vmatprep.mubr.bf16.mxu0 %v892
        %1271 = vmatmul.mubr.bf16.gmra.mrb[0].mxu0 %v891
        %v1272 = vpop.f32.mrb[0].mxu0
        %v1273 = vadd.f32 %v1208, %v1272
        %v1274 = vpop.f32.mrb[0].mxu0
        %v1275 = vpop.f32.mrb[0].mxu0
        %v1276 = vadd.f32 %v1211, %v1275
        %v1277 = vpop.f32.mrb[0].mxu0
        %1278 = vdwg.mxu0
        %p1279 = scmp.eq.s32.totalorder %s18, 0
        // Predicated region
        $region72: #{entity_linking_forward_pallas.1} parent=66 // pred_check
          %p1280 = pneg %p1279
        $region73: #{entity_linking_forward_pallas.1} parent=66 // pred_check_branch
          %1282 = sbr.rel (%p1280) target = $region75
        $region74: #{entity_linking_forward_pallas.1} parent=66 // pred_region
          %vm1283 = vcmask 261120
          %1284 = vst.msk [vmem:[#allocation2] sm:$0xff] %vm1283, %v1249
          %1285 = vst.msk [vmem:[#allocation2 + $0x8] sm:$0xff] %vm1283, %v1252
          %1286 = vst.msk [vmem:[#allocation2 + $0x10] sm:$0xff] %vm1283, %v1257
          %1287 = vst.msk [vmem:[#allocation2 + $0x18] sm:$0xff] %vm1283, %v1260
          %1288 = vst.msk [vmem:[#allocation2 + $0x20] sm:$0xff] %vm1283, %v1265
          %1289 = vst.msk [vmem:[#allocation2 + $0x28] sm:$0xff] %vm1283, %v1268
          %1290 = vst.msk [vmem:[#allocation2 + $0x30] sm:$0xff] %vm1283, %v1273
          %1291 = vst.msk [vmem:[#allocation2 + $0x38] sm:$0xff] %vm1283, %v1276
        $region75: #{entity_linking_forward_pallas.1} parent=66 // pred_fallthru
          _
        %p1292 = scmp.ne.s32.totalorder %s18, 0
        // Predicated region
        $region76: #{entity_linking_forward_pallas.1} parent=66 // pred_check
          %p1293 = pneg %p1292
        $region77: #{entity_linking_forward_pallas.1} parent=66 // pred_check_branch
          %1295 = sbr.rel (%p1293) target = $region79
        $region78: #{entity_linking_forward_pallas.1} parent=66 // pred_region
          %v1296 = vld [vmem:[#allocation2] sm:$0xff]
          %v1297 = vld [vmem:[#allocation2 + $0x8] sm:$0xff]
          %v1298 = vld [vmem:[#allocation2 + $0x10] sm:$0xff]
          %v1299 = vld [vmem:[#allocation2 + $0x18] sm:$0xff]
          %v1300 = vld [vmem:[#allocation2 + $0x20] sm:$0xff]
          %v1301 = vld [vmem:[#allocation2 + $0x28] sm:$0xff]
          %v1302 = vld [vmem:[#allocation2 + $0x30] sm:$0xff]
          %v1303 = vld [vmem:[#allocation2 + $0x38] sm:$0xff]
          %v1304 = vadd.f32 %v1296, %v1249
          %v1305 = vadd.f32 %v1297, %v1252
          %v1306 = vadd.f32 %v1298, %v1257
          %v1307 = vadd.f32 %v1299, %v1260
          %v1308 = vadd.f32 %v1300, %v1265
          %v1309 = vadd.f32 %v1301, %v1268
          %v1310 = vadd.f32 %v1302, %v1273
          %v1311 = vadd.f32 %v1303, %v1276
          %vm1312 = vcmask 261120
          %1313 = vst.msk [vmem:[#allocation2] sm:$0xff] %vm1312, %v1304
          %1314 = vst.msk [vmem:[#allocation2 + $0x8] sm:$0xff] %vm1312, %v1305
          %1315 = vst.msk [vmem:[#allocation2 + $0x10] sm:$0xff] %vm1312, %v1306
          %1316 = vst.msk [vmem:[#allocation2 + $0x18] sm:$0xff] %vm1312, %v1307
          %1317 = vst.msk [vmem:[#allocation2 + $0x20] sm:$0xff] %vm1312, %v1308
          %1318 = vst.msk [vmem:[#allocation2 + $0x28] sm:$0xff] %vm1312, %v1309
          %1319 = vst.msk [vmem:[#allocation2 + $0x30] sm:$0xff] %vm1312, %v1310
          %1320 = vst.msk [vmem:[#allocation2 + $0x38] sm:$0xff] %vm1312, %v1311
        $region79: #{entity_linking_forward_pallas.1} parent=66 // pred_fallthru
          _
        %p1321 = scmp.eq.s32.totalorder %s18, 1
        // Predicated region
        $region80: #{entity_linking_forward_pallas.1} parent=66 // pred_check
          %p1322 = pneg %p1321
        $region81: #{entity_linking_forward_pallas.1} parent=66 // pred_check_branch
          %1324 = sbr.rel (%p1322) target = $region83
        $region82: #{entity_linking_forward_pallas.1} parent=66 // pred_region
          %v1325 = vld [vmem:[%s6] sm:$0xff]
          %v1326 = vld [vmem:[#allocation2] sm:$0xff]
          %v1327 = vld [vmem:[#allocation2 + $0x8] sm:$0xff]
          %v1328 = vld [vmem:[#allocation2 + $0x10] sm:$0xff]
          %v1329 = vld [vmem:[#allocation2 + $0x18] sm:$0xff]
          %v1330 = vld [vmem:[#allocation2 + $0x20] sm:$0xff]
          %v1331 = vld [vmem:[#allocation2 + $0x28] sm:$0xff]
          %v1332 = vld [vmem:[#allocation2 + $0x30] sm:$0xff]
          %v1333 = vld [vmem:[#allocation2 + $0x38] sm:$0xff]
          %v1334 = vlaneseq
          %v1335 = vshrl.u32 %v1334, 7
          %v1336 = vsub.s32 3, %v1335
          %v1337 = vrot.slane %v1325, %v1336
          %v1338 = vadd.f32 %v1326, %v1337
          %v1339 = vadd.f32 %v1327, %v1337
          %v1340 = vadd.f32 %v1328, %v1337
          %v1341 = vadd.f32 %v1329, %v1337
          %v1342 = vadd.f32 %v1330, %v1337
          %v1343 = vadd.f32 %v1331, %v1337
          %v1344 = vadd.f32 %v1332, %v1337
          %v1345 = vadd.f32 %v1333, %v1337
          %vm1346 = vcmask 261120
          %1347 = vst.msk [vmem:[#allocation4] sm:$0xff] %vm1346, %v1342
          %1348 = vst.msk [vmem:[#allocation4 + $0x8] sm:$0xff] %vm1346, %v1343
          %1351 = vrot.lane.b32.xlu0 %v1344, 32
          %v1352 = vpop.permute.xlu0 %1351
          %1353 = vrot.lane.b32.xlu0 %v1345, 32
          %v1354 = vpop.permute.xlu0 %1353
          %vm1357 = vcmask 523520
          %1358 = vst.msk [vmem:[#allocation4] sm:$0xff] %vm1357, %v1352
          %1359 = vst.msk [vmem:[#allocation4 + $0x8] sm:$0xff] %vm1357, %v1354
          %1362 = vrot.lane.b32.xlu0 %v1338, 64
          %v1363 = vpop.permute.xlu0 %1362
          %1364 = vrot.lane.b32.xlu0 %v1339, 64
          %v1365 = vpop.permute.xlu0 %1364
          %vm1368 = vcmask 785920
          %1369 = vst.msk [vmem:[#allocation4] sm:$0xff] %vm1368, %v1363
          %1370 = vst.msk [vmem:[#allocation4 + $0x8] sm:$0xff] %vm1368, %v1365
          %1373 = vrot.lane.b32.xlu0 %v1340, 96
          %v1374 = vpop.permute.xlu0 %1373
          %1375 = vrot.lane.b32.xlu0 %v1341, 96
          %v1376 = vpop.permute.xlu0 %1375
          %vm1379 = vcmask 1048320
          %1380 = vst.msk [vmem:[#allocation4] sm:$0xff] %vm1379, %v1374
          %1381 = vst.msk [vmem:[#allocation4 + $0x8] sm:$0xff] %vm1379, %v1376
          %v1382 = vld [vmem:[#allocation4] sm:$0xff]
          %v1383 = vld [vmem:[#allocation4 + $0x8] sm:$0xff]
          %v1384 = vpack.c.bf16 %v1383, %v1382
          %v1385 = vld [vmem:[%s5 + $0xc] sm:$0xf]
          %v1386 = vld [vmem:[%s5 + $0x1c] sm:$0xf]
          %v1387 = vld [vmem:[%s5 + $0x2c] sm:$0xf]
          %v1388 = vld [vmem:[%s5 + $0x3c] sm:$0xf]
          %v1389 = vld [vmem:[%s5 + $0x4c] sm:$0xf]
          %v1390 = vld [vmem:[%s5 + $0x5c] sm:$0xf]
          %v1391 = vld [vmem:[%s5 + $0x6c] sm:$0xf]
          %v1392 = vld [vmem:[%s5 + $0x7c] sm:$0xf]
          %v1393 = vld [vmem:[%s5 + $0x8c] sm:$0xf]
          %v1394 = vld [vmem:[%s5 + $0x9c] sm:$0xf]
          %v1395 = vld [vmem:[%s5 + $0xac] sm:$0xf]
          %v1396 = vld [vmem:[%s5 + $0xbc] sm:$0xf]
          %v1397 = vld [vmem:[%s5 + $0xcc] sm:$0xf]
          %v1398 = vld [vmem:[%s5 + $0xdc] sm:$0xf]
          %v1399 = vld [vmem:[%s5 + $0xec] sm:$0xf]
          %v1400 = vld [vmem:[%s5 + $0xfc] sm:$0xf]
          %v1417 = vunpack.c.l.b16 %v1385
          %v1418 = vunpack.c.l.b16 %v1386
          %v1419 = vunpack.c.l.b16 %v1387
          %v1420 = vunpack.c.l.b16 %v1388
          %v1421 = vunpack.c.l.b16 %v1389
          %v1422 = vunpack.c.l.b16 %v1390
          %v1423 = vunpack.c.l.b16 %v1391
          %v1424 = vunpack.c.l.b16 %v1392
          %v1425 = vunpack.c.l.b16 %v1393
          %v1426 = vunpack.c.l.b16 %v1394
          %v1427 = vunpack.c.l.b16 %v1395
          %v1428 = vunpack.c.l.b16 %v1396
          %v1429 = vunpack.c.l.b16 %v1397
          %v1430 = vunpack.c.l.b16 %v1398
          %v1431 = vunpack.c.l.b16 %v1399
          %v1432 = vunpack.c.l.b16 %v1400
          %v1433 = vpack.c.b16 %v1418, %v1417
          %v1434 = vpack.c.b16 %v1420, %v1419
          %v1435 = vpack.c.b16 %v1422, %v1421
          %v1436 = vpack.c.b16 %v1424, %v1423
          %v1437 = vpack.c.b16 %v1426, %v1425
          %v1438 = vpack.c.b16 %v1428, %v1427
          %v1439 = vpack.c.b16 %v1430, %v1429
          %v1440 = vpack.c.b16 %v1432, %v1431
          %1450 = vrot.lane.b32.xlu0 %v1337, 96
          %v1451 = vpop.permute.xlu0 %1450
          %1453 = vmatprep.subr.bf16.mxu0 0
          %1454 = vmatpush1.bf16.msra.mxu0 %v1433
          %1455 = vmatprep.subr.bf16.mxu0 0
          %1456 = vmatpush1.bf16.msra.mxu0 %v1434
          %1457 = vmatprep.subr.bf16.mxu0 0
          %1458 = vmatpush1.bf16.msra.mxu0 %v1435
          %1459 = vmatprep.subr.bf16.mxu0 0
          %1460 = vmatpush1.bf16.msra.mxu0 %v1436
          %1461 = vmatprep.subr.bf16.mxu0 0
          %1462 = vmatpush1.bf16.msra.mxu0 %v1437
          %1463 = vmatprep.subr.bf16.mxu0 0
          %1464 = vmatpush1.bf16.msra.mxu0 %v1438
          %1465 = vmatprep.subr.bf16.mxu0 0
          %1466 = vmatpush1.bf16.msra.mxu0 %v1439
          %1467 = vmatprep.subr.bf16.mxu0 0
          %1468 = vmatpush1.bf16.msra.mxu0 %v1440
          %1469 = vmatprep.subr.bf16.mxu0 0
          %1470 = vmatpush1.bf16.msra.mxu0 0
          %1471 = vmatprep.subr.bf16.mxu0 0
          %1472 = vmatpush1.bf16.msra.mxu0 0
          %1473 = vmatprep.subr.bf16.mxu0 0
          %1474 = vmatpush1.bf16.msra.mxu0 0
          %1475 = vmatprep.subr.bf16.mxu0 0
          %1476 = vmatpush1.bf16.msra.mxu0 0
          %1477 = vmatprep.subr.bf16.mxu0 0
          %1478 = vmatpush1.bf16.msra.mxu0 0
          %1479 = vmatprep.subr.bf16.mxu0 0
          %1480 = vmatpush1.bf16.msra.mxu0 0
          %1481 = vmatprep.subr.bf16.mxu0 0
          %1482 = vmatpush1.bf16.msra.mxu0 0
          %1483 = vmatprep.subr.bf16.mxu0 0
          %1484 = vmatpush1.bf16.msra.mxu0 0
          %1485 = vmatprep.mubr.bf16.mxu0 0
          %1486 = vmatmul.mubr.bf16.gmra.mrb[0].mxu0 %v1384
          %v1487 = vpop.f32.mrb[0].mxu0
          %v1488 = vadd.f32 %v1451, %v1487
          %v1489 = vpop.f32.mrb[0].mxu0
          %v1490 = vpop.f32.mrb[0].mxu0
          %v1491 = vadd.f32 %v1451, %v1490
          %v1492 = vpop.f32.mrb[0].mxu0
          %1493 = vdwg.mxu0
          %vm1494 = vcmp.gt.f32.partialorder %v1488, 0.0
          %vm1495 = vcmp.gt.f32.partialorder %v1491, 0.0
          %v1496 = vmul.f32 %v1488, 0.1
          %v1497 = vmul.f32 %v1491, 0.1
          %v1498 = vsel %vm1494, %v1488, %v1496
          %v1499 = vsel %vm1495, %v1491, %v1497
          %v1500 = vmul.f32 %v1342, %v1338
          %v1501 = vmul.f32 %v1343, %v1339
          %v1502 = vmul.f32 %v1344, %v1340
          %v1503 = vmul.f32 %v1345, %v1341
          %vm1504 = vcmask 523264
          %1505 = vst.msk [vmem:[#allocation3] sm:$0xff] %vm1504, %v1498
          %1506 = vst.msk [vmem:[#allocation3 + $0x8] sm:$0xff] %vm1504, %v1499
          %1509 = vrot.lane.b32.xlu0 %v1500, 64
          %v1510 = vpop.permute.xlu0 %1509
          %1511 = vrot.lane.b32.xlu0 %v1501, 64
          %v1512 = vpop.permute.xlu0 %1511
          %1515 = vst.msk [vmem:[#allocation3] sm:$0xff] %vm1368, %v1510
          %1516 = vst.msk [vmem:[#allocation3 + $0x8] sm:$0xff] %vm1368, %v1512
          %1519 = vrot.lane.b32.xlu0 %v1502, 96
          %v1520 = vpop.permute.xlu0 %1519
          %1521 = vrot.lane.b32.xlu0 %v1503, 96
          %v1522 = vpop.permute.xlu0 %1521
          %1525 = vst.msk [vmem:[#allocation3] sm:$0xff] %vm1379, %v1520
          %1526 = vst.msk [vmem:[#allocation3 + $0x8] sm:$0xff] %vm1379, %v1522
          %v1527 = vld [vmem:[#allocation3] sm:$0xff]
          %v1528 = vld [vmem:[#allocation3 + $0x8] sm:$0xff]
          %v1529 = vpack.c.bf16 %v1528, %v1527
          %v1530 = vadd.f32 %v1500, %v1502
          %v1531 = vadd.f32 %v1501, %v1503
          %v1532 = vsel %vm1346, %v1530, 0.0
          %1533 = vadd.xlane.f32.xlu0 %v1532
          %v1534 = vpop.xlane.xlu0 %1533
          %v1535 = vsel %vm1346, %v1531, 0.0
          %1536 = vadd.xlane.f32.xlu0 %v1535
          %v1537 = vpop.xlane.xlu0 %1536
          %v1538 = vmul.f32 %v1342, %v1342
          %v1539 = vmul.f32 %v1343, %v1343
          %v1540 = vmul.f32 %v1344, %v1344
          %v1541 = vmul.f32 %v1345, %v1345
          %v1542 = vadd.f32 %v1538, %v1540
          %v1543 = vadd.f32 %v1539, %v1541
          %v1544 = vsel %vm1346, %v1542, 0.0
          %1545 = vadd.xlane.f32.xlu0 %v1544
          %v1546 = vpop.xlane.xlu0 %1545
          %v1547 = vsel %vm1346, %v1543, 0.0
          %1548 = vadd.xlane.f32.xlu0 %v1547
          %v1549 = vpop.xlane.xlu0 %1548
          %v1550 = vmul.f32 %v1338, %v1338
          %v1551 = vmul.f32 %v1339, %v1339
          %v1552 = vmul.f32 %v1340, %v1340
          %v1553 = vmul.f32 %v1341, %v1341
          %v1554 = vadd.f32 %v1550, %v1552
          %v1555 = vadd.f32 %v1551, %v1553
          %v1556 = vsel %vm1346, %v1554, 0.0
          %1557 = vadd.xlane.f32.xlu0 %v1556
          %v1558 = vpop.xlane.xlu0 %1557
          %v1559 = vsel %vm1346, %v1555, 0.0
          %1560 = vadd.xlane.f32.xlu0 %v1559
          %v1561 = vpop.xlane.xlu0 %1560
          %v1562 = vmul.f32 %v1546, %v1558
          %v1563 = vmul.f32 %v1549, %v1561
          %v1564 = vmax.f32 %v1562, 1e-12
          %v1565 = vmax.f32 %v1563, 1e-12
          %v1566 = vrsqrt.pop %v1564
          %v1567 = vrsqrt.pop %v1565
          %v1568 = vmul.f32 %v1534, %v1566
          %v1569 = vmul.f32 %v1537, %v1567
          %v1570 = vld [vmem:[%s5] sm:$0xf]
          %v1571 = vld [vmem:[%s5 + $0x10] sm:$0xf]
          %v1572 = vld [vmem:[%s5 + $0x20] sm:$0xf]
          %v1573 = vld [vmem:[%s5 + $0x30] sm:$0xf]
          %v1574 = vld [vmem:[%s5 + $0x40] sm:$0xf]
          %v1575 = vld [vmem:[%s5 + $0x50] sm:$0xf]
          %v1576 = vld [vmem:[%s5 + $0x60] sm:$0xf]
          %v1577 = vld [vmem:[%s5 + $0x70] sm:$0xf]
          %v1578 = vld [vmem:[%s5 + $0x80] sm:$0xf]
          %v1579 = vld [vmem:[%s5 + $0x90] sm:$0xf]
          %v1580 = vld [vmem:[%s5 + $0xa0] sm:$0xf]
          %v1581 = vld [vmem:[%s5 + $0xb0] sm:$0xf]
          %v1582 = vld [vmem:[%s5 + $0xc0] sm:$0xf]
          %v1583 = vld [vmem:[%s5 + $0xd0] sm:$0xf]
          %v1584 = vld [vmem:[%s5 + $0xe0] sm:$0xf]
          %v1585 = vld [vmem:[%s5 + $0xf0] sm:$0xf]
          %v1586 = vld [vmem:[%s5 + $0x4] sm:$0xf]
          %v1587 = vld [vmem:[%s5 + $0x14] sm:$0xf]
          %v1588 = vld [vmem:[%s5 + $0x24] sm:$0xf]
          %v1589 = vld [vmem:[%s5 + $0x34] sm:$0xf]
          %v1590 = vld [vmem:[%s5 + $0x44] sm:$0xf]
          %v1591 = vld [vmem:[%s5 + $0x54] sm:$0xf]
          %v1592 = vld [vmem:[%s5 + $0x64] sm:$0xf]
          %v1593 = vld [vmem:[%s5 + $0x74] sm:$0xf]
          %v1594 = vld [vmem:[%s5 + $0x84] sm:$0xf]
          %v1595 = vld [vmem:[%s5 + $0x94] sm:$0xf]
          %v1596 = vld [vmem:[%s5 + $0xa4] sm:$0xf]
          %v1597 = vld [vmem:[%s5 + $0xb4] sm:$0xf]
          %v1598 = vld [vmem:[%s5 + $0xc4] sm:$0xf]
          %v1599 = vld [vmem:[%s5 + $0xd4] sm:$0xf]
          %v1600 = vld [vmem:[%s5 + $0xe4] sm:$0xf]
          %v1601 = vld [vmem:[%s5 + $0xf4] sm:$0xf]
          %v1618 = vunpack.c.l.b16 %v1586
          %v1619 = vunpack.c.l.b16 %v1587
          %v1620 = vunpack.c.l.b16 %v1588
          %v1621 = vunpack.c.l.b16 %v1589
          %v1622 = vunpack.c.l.b16 %v1590
          %v1623 = vunpack.c.l.b16 %v1591
          %v1624 = vunpack.c.l.b16 %v1592
          %v1625 = vunpack.c.l.b16 %v1593
          %v1626 = vunpack.c.l.b16 %v1594
          %v1627 = vunpack.c.l.b16 %v1595
          %v1628 = vunpack.c.l.b16 %v1596
          %v1629 = vunpack.c.l.b16 %v1597
          %v1630 = vunpack.c.l.b16 %v1598
          %v1631 = vunpack.c.l.b16 %v1599
          %v1632 = vunpack.c.l.b16 %v1600
          %v1633 = vunpack.c.l.b16 %v1601
          %v1634 = vpack.c.b16 %v1619, %v1618
          %v1635 = vpack.c.b16 %v1621, %v1620
          %v1636 = vpack.c.b16 %v1623, %v1622
          %v1637 = vpack.c.b16 %v1625, %v1624
          %v1638 = vpack.c.b16 %v1627, %v1626
          %v1639 = vpack.c.b16 %v1629, %v1628
          %v1640 = vpack.c.b16 %v1631, %v1630
          %v1641 = vpack.c.b16 %v1633, %v1632
          %1650 = vmatprep.subr.bf16.mxu0 0
          %1651 = vmatpush1.bf16.msra.mxu0 %v1634
          %1652 = vmatprep.subr.bf16.mxu0 0
          %1653 = vmatpush1.bf16.msra.mxu0 %v1635
          %1654 = vmatprep.subr.bf16.mxu0 0
          %1655 = vmatpush1.bf16.msra.mxu0 %v1636
          %1656 = vmatprep.subr.bf16.mxu0 0
          %1657 = vmatpush1.bf16.msra.mxu0 %v1637
          %1658 = vmatprep.subr.bf16.mxu0 0
          %1659 = vmatpush1.bf16.msra.mxu0 %v1638
          %1660 = vmatprep.subr.bf16.mxu0 0
          %1661 = vmatpush1.bf16.msra.mxu0 %v1639
          %1662 = vmatprep.subr.bf16.mxu0 0
          %1663 = vmatpush1.bf16.msra.mxu0 %v1640
          %1664 = vmatprep.subr.bf16.mxu0 0
          %1665 = vmatpush1.bf16.msra.mxu0 %v1641
          %1666 = vmatprep.subr.bf16.mxu0 0
          %1667 = vmatpush1.bf16.msra.mxu0 0
          %1668 = vmatprep.subr.bf16.mxu0 0
          %1669 = vmatpush1.bf16.msra.mxu0 0
          %1670 = vmatprep.subr.bf16.mxu0 0
          %1671 = vmatpush1.bf16.msra.mxu0 0
          %1672 = vmatprep.subr.bf16.mxu0 0
          %1673 = vmatpush1.bf16.msra.mxu0 0
          %1674 = vmatprep.subr.bf16.mxu0 0
          %1675 = vmatpush1.bf16.msra.mxu0 0
          %1676 = vmatprep.subr.bf16.mxu0 0
          %1677 = vmatpush1.bf16.msra.mxu0 0
          %1678 = vmatprep.subr.bf16.mxu0 0
          %1679 = vmatpush1.bf16.msra.mxu0 0
          %1680 = vmatprep.subr.bf16.mxu0 0
          %1681 = vmatpush1.bf16.msra.mxu0 0
          %1682 = vmatprep.mubr.bf16.mxu0 0
          %1683 = vmatmul.mubr.bf16.gmra.mrb[0].mxu0 %v1384
          %v1684 = vpop.f32.mrb[0].mxu0
          %v1685 = vadd.f32 0.0, %v1684
          %v1686 = vpop.f32.mrb[0].mxu0
          %v1687 = vpop.f32.mrb[0].mxu0
          %v1688 = vadd.f32 0.0, %v1687
          %v1689 = vpop.f32.mrb[0].mxu0
          %1690 = vdwg.mxu0
          %v1707 = vunpack.c.l.b16 %v1570
          %v1708 = vunpack.c.l.b16 %v1571
          %v1709 = vunpack.c.l.b16 %v1572
          %v1710 = vunpack.c.l.b16 %v1573
          %v1711 = vunpack.c.l.b16 %v1574
          %v1712 = vunpack.c.l.b16 %v1575
          %v1713 = vunpack.c.l.b16 %v1576
          %v1714 = vunpack.c.l.b16 %v1577
          %v1715 = vunpack.c.l.b16 %v1578
          %v1716 = vunpack.c.l.b16 %v1579
          %v1717 = vunpack.c.l.b16 %v1580
          %v1718 = vunpack.c.l.b16 %v1581
          %v1719 = vunpack.c.l.b16 %v1582
          %v1720 = vunpack.c.l.b16 %v1583
          %v1721 = vunpack.c.l.b16 %v1584
          %v1722 = vunpack.c.l.b16 %v1585
          %v1723 = vpack.c.b16 %v1708, %v1707
          %v1724 = vpack.c.b16 %v1710, %v1709
          %v1725 = vpack.c.b16 %v1712, %v1711
          %v1726 = vpack.c.b16 %v1714, %v1713
          %v1727 = vpack.c.b16 %v1716, %v1715
          %v1728 = vpack.c.b16 %v1718, %v1717
          %v1729 = vpack.c.b16 %v1720, %v1719
          %v1730 = vpack.c.b16 %v1722, %v1721
          %1739 = vmatprep.subr.bf16.mxu0 0
          %1740 = vmatpush1.bf16.msra.mxu0 %v1723
          %1741 = vmatprep.subr.bf16.mxu0 0
          %1742 = vmatpush1.bf16.msra.mxu0 %v1724
          %1743 = vmatprep.subr.bf16.mxu0 0
          %1744 = vmatpush1.bf16.msra.mxu0 %v1725
          %1745 = vmatprep.subr.bf16.mxu0 0
          %1746 = vmatpush1.bf16.msra.mxu0 %v1726
          %1747 = vmatprep.subr.bf16.mxu0 0
          %1748 = vmatpush1.bf16.msra.mxu0 %v1727
          %1749 = vmatprep.subr.bf16.mxu0 0
          %1750 = vmatpush1.bf16.msra.mxu0 %v1728
          %1751 = vmatprep.subr.bf16.mxu0 0
          %1752 = vmatpush1.bf16.msra.mxu0 %v1729
          %1753 = vmatprep.subr.bf16.mxu0 0
          %1754 = vmatpush1.bf16.msra.mxu0 %v1730
          %1755 = vmatprep.subr.bf16.mxu0 0
          %1756 = vmatpush1.bf16.msra.mxu0 0
          %1757 = vmatprep.subr.bf16.mxu0 0
          %1758 = vmatpush1.bf16.msra.mxu0 0
          %1759 = vmatprep.subr.bf16.mxu0 0
          %1760 = vmatpush1.bf16.msra.mxu0 0
          %1761 = vmatprep.subr.bf16.mxu0 0
          %1762 = vmatpush1.bf16.msra.mxu0 0
          %1763 = vmatprep.subr.bf16.mxu0 0
          %1764 = vmatpush1.bf16.msra.mxu0 0
          %1765 = vmatprep.subr.bf16.mxu0 0
          %1766 = vmatpush1.bf16.msra.mxu0 0
          %1767 = vmatprep.subr.bf16.mxu0 0
          %1768 = vmatpush1.bf16.msra.mxu0 0
          %1769 = vmatprep.subr.bf16.mxu0 0
          %1770 = vmatpush1.bf16.msra.mxu0 0
          %1771 = vmatprep.mubr.bf16.mxu0 0
          %1772 = vmatmul.mubr.bf16.gmra.mrb[0].mxu0 %v1529
          %v1773 = vpop.f32.mrb[0].mxu0
          %v1774 = vadd.f32 %v1685, %v1773
          %v1775 = vpop.f32.mrb[0].mxu0
          %v1776 = vpop.f32.mrb[0].mxu0
          %v1777 = vadd.f32 %v1688, %v1776
          %v1778 = vpop.f32.mrb[0].mxu0
          %1779 = vdwg.mxu0
          %v1780 = vld [vmem:[%s4] sm:$0xf]
          %v1781 = vld [vmem:[%s4 + $0x4] sm:$0xf]
          %v1782 = vld [vmem:[%s5 + $0x8] sm:$0xf]
          %v1783 = vld [vmem:[%s5 + $0x18] sm:$0xf]
          %v1784 = vld [vmem:[%s5 + $0x28] sm:$0xf]
          %v1785 = vld [vmem:[%s5 + $0x38] sm:$0xf]
          %v1786 = vld [vmem:[%s5 + $0x48] sm:$0xf]
          %v1787 = vld [vmem:[%s5 + $0x58] sm:$0xf]
          %v1788 = vld [vmem:[%s5 + $0x68] sm:$0xf]
          %v1789 = vld [vmem:[%s5 + $0x78] sm:$0xf]
          %v1790 = vld [vmem:[%s5 + $0x88] sm:$0xf]
          %v1791 = vld [vmem:[%s5 + $0x98] sm:$0xf]
          %v1792 = vld [vmem:[%s5 + $0xa8] sm:$0xf]
          %v1793 = vld [vmem:[%s5 + $0xb8] sm:$0xf]
          %v1794 = vld [vmem:[%s5 + $0xc8] sm:$0xf]
          %v1795 = vld [vmem:[%s5 + $0xd8] sm:$0xf]
          %v1796 = vld [vmem:[%s5 + $0xe8] sm:$0xf]
          %v1797 = vld [vmem:[%s5 + $0xf8] sm:$0xf]
          %v1800 = vunpack.c.l.b16 %v1780
          %v1801 = vunpack.c.l.b16 %v1781
          %v1802 = vpack.c.b16 %v1801, %v1800
          %v1820 = vunpack.c.l.b16 %v1782
          %v1821 = vunpack.c.l.b16 %v1783
          %v1822 = vunpack.c.l.b16 %v1784
          %v1823 = vunpack.c.l.b16 %v1785
          %v1824 = vunpack.c.l.b16 %v1786
          %v1825 = vunpack.c.l.b16 %v1787
          %v1826 = vunpack.c.l.b16 %v1788
          %v1827 = vunpack.c.l.b16 %v1789
          %v1828 = vunpack.c.l.b16 %v1790
          %v1829 = vunpack.c.l.b16 %v1791
          %v1830 = vunpack.c.l.b16 %v1792
          %v1831 = vunpack.c.l.b16 %v1793
          %v1832 = vunpack.c.l.b16 %v1794
          %v1833 = vunpack.c.l.b16 %v1795
          %v1834 = vunpack.c.l.b16 %v1796
          %v1835 = vunpack.c.l.b16 %v1797
          %v1836 = vpack.c.b16 %v1821, %v1820
          %v1837 = vpack.c.b16 %v1823, %v1822
          %v1838 = vpack.c.b16 %v1825, %v1824
          %v1839 = vpack.c.b16 %v1827, %v1826
          %v1840 = vpack.c.b16 %v1829, %v1828
          %v1841 = vpack.c.b16 %v1831, %v1830
          %v1842 = vpack.c.b16 %v1833, %v1832
          %v1843 = vpack.c.b16 %v1835, %v1834
          %1852 = vmatprep.subr.bf16.mxu0 0
          %1853 = vmatpush1.bf16.msra.mxu0 %v1836
          %1854 = vmatprep.subr.bf16.mxu0 0
          %1855 = vmatpush1.bf16.msra.mxu0 %v1837
          %1856 = vmatprep.subr.bf16.mxu0 0
          %1857 = vmatpush1.bf16.msra.mxu0 %v1838
          %1858 = vmatprep.subr.bf16.mxu0 0
          %1859 = vmatpush1.bf16.msra.mxu0 %v1839
          %1860 = vmatprep.subr.bf16.mxu0 0
          %1861 = vmatpush1.bf16.msra.mxu0 %v1840
          %1862 = vmatprep.subr.bf16.mxu0 0
          %1863 = vmatpush1.bf16.msra.mxu0 %v1841
          %1864 = vmatprep.subr.bf16.mxu0 0
          %1865 = vmatpush1.bf16.msra.mxu0 %v1842
          %1866 = vmatprep.subr.bf16.mxu0 0
          %1867 = vmatpush1.bf16.msra.mxu0 %v1843
          %1868 = vmatprep.subr.bf16.mxu0 0
          %1869 = vmatpush1.bf16.msra.mxu0 0
          %1870 = vmatprep.subr.bf16.mxu0 0
          %1871 = vmatpush1.bf16.msra.mxu0 0
          %1872 = vmatprep.subr.bf16.mxu0 0
          %1873 = vmatpush1.bf16.msra.mxu0 0
          %1874 = vmatprep.subr.bf16.mxu0 0
          %1875 = vmatpush1.bf16.msra.mxu0 0
          %1876 = vmatprep.subr.bf16.mxu0 0
          %1877 = vmatpush1.bf16.msra.mxu0 0
          %1878 = vmatprep.subr.bf16.mxu0 0
          %1879 = vmatpush1.bf16.msra.mxu0 0
          %1880 = vmatprep.subr.bf16.mxu0 0
          %1881 = vmatpush1.bf16.msra.mxu0 0
          %1882 = vmatprep.subr.bf16.mxu0 0
          %1883 = vmatpush1.bf16.msra.mxu0 0
          %1884 = vmatprep.mubr.bf16.mxu0 0
          %1885 = vmatmul.mubr.bf16.gmra.mrb[0].mxu0 %v1802
          %v1886 = vpop.f32.mrb[0].mxu0
          %v1887 = vadd.f32 0.0, %v1886
          %v1888 = vpop.f32.mrb[0].mxu0
          %v1889 = vpop.f32.mrb[0].mxu0
          %v1890 = vadd.f32 0.0, %v1889
          %v1891 = vpop.f32.mrb[0].mxu0
          %1892 = vdwg.mxu0
          %v1893 = vadd.f32 %v1774, %v1887
          %v1894 = vadd.f32 %v1777, %v1890
          %v1895 = vlaneseq
          %v1896 = vshrl.u32 %v1895, 7
          %v1897 = vsub.s32 1, %v1896
          %v1898 = vrot.slane %v1325, %v1897
          %v1899 = vmul.f32 %v1568, %v1898
          %v1900 = vmul.f32 %v1569, %v1898
          %v1901 = vadd.f32 %v1893, %v1899
          %v1902 = vadd.f32 %v1894, %v1900
          %v1903 = vlaneseq
          %v1904 = vshrl.u32 %v1903, 7
          %v1905 = vsub.s32 0, %v1904
          %v1906 = vrot.slane %v1325, %v1905
          %v1907 = vadd.f32 %v1901, %v1906
          %v1908 = vadd.f32 %v1902, %v1906
          %vm1909 = vcmp.gt.f32.partialorder %v1907, 0.0
          %vm1910 = vcmp.gt.f32.partialorder %v1908, 0.0
          %v1911 = vmul.f32 %v1907, 0.1
          %v1912 = vmul.f32 %v1908, 0.1
          %v1913 = vsel %vm1909, %v1907, %v1911
          %v1914 = vsel %vm1910, %v1908, %v1912
          %v1915 = vlaneseq
          %v1916 = vshrl.u32 %v1915, 7
          %v1917 = vsub.s32 2, %v1916
          %v1918 = vrot.slane %v1325, %v1917
          %v1919 = vmul.f32 %v1913, %v1918
          %v1920 = vmul.f32 %v1914, %v1918
          %1921 = vadd.xlane.f32.xlu0 %v1919
          %v1922 = vpop.xlane.xlu0 %1921
          %1923 = vadd.xlane.f32.xlu0 %v1920
          %v1924 = vpop.xlane.xlu0 %1923
          %v1925 = vadd.f32 %v1922, %v1337
          %v1926 = vadd.f32 %v1924, %v1337
          %1929 = vrot.lane.b32.xlu0 %v1925, 32
          %v1930 = vpop.permute.xlu0 %1929
          %1931 = vrot.lane.b32.xlu0 %v1926, 32
          %v1932 = vpop.permute.xlu0 %1931
          %vm1935 = vcmask 7168
          %1936 = vst.msk [vmem:[%s7] sm:$0xff] %vm1935, %v1930
          %1937 = vst.msk [vmem:[%s7 + $0x8] sm:$0xff] %vm1935, %v1932
        $region83: #{entity_linking_forward_pallas.1} parent=66 // pred_fallthru
          _
        // Predicated region
        $region84: #{entity_linking_forward_pallas.1} parent=66 // pred_check
          %p1938 = pneg %p193
        $region85: #{entity_linking_forward_pallas.1} parent=66 // pred_check_branch
          %1940 = sbr.rel (%p1938) target = $region87
        $region86: #{entity_linking_forward_pallas.1} parent=66 // pred_region
          _
        $region87: #{entity_linking_forward_pallas.1} parent=66 // pred_fallthru
          _
        // Predicated region
        $region88: #{entity_linking_forward_pallas.1} parent=66 // pred_check
          %p1941 = pneg %p193
        $region89: #{entity_linking_forward_pallas.1} parent=66 // pred_check_branch
          %1943 = sbr.rel (%p1941) target = $region91
        $region90: #{entity_linking_forward_pallas.1} parent=66 // pred_region
          _
        $region91: #{entity_linking_forward_pallas.1} parent=66 // pred_fallthru
          _
      $region67: #{entity_linking_forward_pallas.1} parent=5 // pred_fallthru
        _
      %p1944 = scmp.le.s32.totalorder 2, %s13
      // Predicated region
      $region92: #{entity_linking_forward_pallas.1} parent=5 // pred_check
        %p1945 = pneg %p1944
      $region93: #{entity_linking_forward_pallas.1} parent=5 // pred_check_branch
        %1947 = sbr.rel (%p1945) target = $region95
      $region94: #{entity_linking_forward_pallas.1} parent=5 // pred_region
        %s1948 = ssub.s32 %s13, 2
      $region95: #{entity_linking_forward_pallas.1} parent=5 // pred_fallthru
        _
    $region6: #{entity_linking_forward_pallas.1} parent=1 // loop_footer
      %s17 = sadd.s32 1, %s13
    $region7: #{entity_linking_forward_pallas.1} parent=1 // loop_footer_branch
      %12 = sbr.rel target = $region3
    $region8: #{entity_linking_forward_pallas.1} parent=1 // loop_exit
      _

</llo_original>
